<compile_context>
chip_gen: v5e
topology: v5e:2x2
jax: 0.10.0
libtpu: 0.0.40
codegen_flags: <defaults>
</compile_context>

<pallas_src>
import functools

import jax
import jax.numpy as jnp
from jax.experimental import pallas as pl
from jax.experimental.pallas import tpu as pltpu


# ------------------------------ helpers ------------------------------------ #
def _round_up(x, m):
    return (x + m - 1) // m * m


def _cdiv(a, b):
    return (a + b - 1) // b


def _vmem_padded_bytes(shape, dtype):
    """Rough VMEM footprint of one buffer with (sublane, lane) tiling."""
    isz = jnp.dtype(dtype).itemsize
    shape = tuple(shape)
    if len(shape) < 2:
        shape = (1,) * (2 - len(shape)) + shape
    lead = 1
    for d in shape[:-2]:
        lead *= d
    sub = _round_up(shape[-2], 8 * (4 // isz))   # f32 -> 8, bf16 -> 16 sublanes
    lane = _round_up(shape[-1], 128)
    return lead * sub * lane * isz


@functools.lru_cache(maxsize=1)
def _vmem_capacity_bytes():
    """Per-core VMEM capacity; conservative fallback if the query fails."""
    try:
        return int(pltpu.get_tpu_info().vmem_capacity_bytes)
    except Exception:
        return 64 << 20          # v7x per-TensorCore VMEM (safe lower bound)


# ----------------------------- Pallas kernels ------------------------------- #
def _make_kernel_folded(kh, th, w_out, k_dim, c_lane, stride, dilation):
    """kh MXU matmuls, K = kw*C_in (kw taps folded into the contraction)."""

    def kernel(x_ref, w_ref, scale_ref, shift_ref, o_ref, acc_ref):
        # x_ref:     (1, H_pad, W_out, k_dim)  bf16   kw-folded padded image
        # w_ref:     (kh, k_dim, c_lane)       bf16
        # scale_ref: (1, c_lane)               f32    BN scale (f32 epilogue)
        # shift_ref: (1, c_lane)               f32    BN shift
        # o_ref:     (1, th, w_out, c_lane)    bf16
        # acc_ref:   (th*w_out, c_lane)        f32    VMEM scratch accumulator
        hb = pl.program_id(1)
        h0 = pl.multiple_of(hb * (th * stride), th * stride)
        for i in range(kh):                   # unrolled: kh deep MXU matmuls
            hs = h0 + i * dilation
            if stride == 1:
                x_slab = x_ref[0, pl.ds(hs, th), :, :]
            else:
                # Strided slice on the leading (H) axis only -> cheap.
                x_slab = x_ref[0, pl.ds(hs, th, stride), :, :]
            part = jnp.dot(x_slab.reshape(th * w_out, k_dim), w_ref[i],
                           preferred_element_type=jnp.float32)
            if i == 0:
                acc_ref[...] = part
            else:
                acc_ref[...] += part
        y = jnp.maximum(acc_ref[...] * scale_ref[...] + shift_ref[...], 0.0)
        o_ref[...] = y.reshape(1, th, w_out, c_lane).astype(o_ref.dtype)

    return kernel


def _make_kernel_taps(kh, kw, th, w_out, c_in, c_lane, stride, dilation):
    """kh*kw per-tap matmuls with K = C_in (used when C_in is already deep)."""

    def kernel(x_ref, w_ref, scale_ref, shift_ref, o_ref, acc_ref):
        # x_ref:     (1, H_pad, W_pad, c_in)   bf16
        # w_ref:     (kh*kw, c_in, c_lane)     bf16
        hb = pl.program_id(1)
        h0 = pl.multiple_of(hb * (th * stride), th * stride)
        for t in range(kh * kw):
            i, j = divmod(t, kw)
            hs = h0 + i * dilation
            ws = j * dilation
            if stride == 1:
                x_slab = x_ref[0, pl.ds(hs, th), pl.ds(ws, w_out), :]
            else:
                # TODO(synk): de-interleave W stride phases in the wrapper so
                # these loads become unit-stride on the sublane axis.
                x_slab = x_ref[0, pl.ds(hs, th, stride), pl.ds(ws, w_out, stride), :]
            part = jnp.dot(x_slab.reshape(th * w_out, c_in), w_ref[t],
                           preferred_element_type=jnp.float32)
            if t == 0:
                acc_ref[...] = part
            else:
                acc_ref[...] += part
        y = jnp.maximum(acc_ref[...] * scale_ref[...] + shift_ref[...], 0.0)
        o_ref[...] = y.reshape(1, th, w_out, c_lane).astype(o_ref.dtype)

    return kernel


# ------------------------------ JAX wrapper --------------------------------- #
@functools.partial(jax.jit, static_argnames=("stride", "padding", "dilation",
                                             "out_layout", "out_dtype"))
def basic_conv2d(x, conv_w, bn_gamma, bn_beta, bn_mean, bn_var,
                 stride=1, padding=0, dilation=1, eps=1e-5,
                 out_layout="NCHW", out_dtype=jnp.float32):
    """BasicConv2d forward: conv(no bias) -> BN (inference stats) -> ReLU.

    x:       [N, C_in, H, W]   (NCHW, like PyTorch)
    conv_w:  [C_out, C_in, kh, kw]
    returns: [N, C_out, H_out, W_out]  (out_dtype; default f32 NCHW like the module)
             or NHWC when out_layout == "NHWC" (for chaining blocks).
    """
    N, C_in, H, W = x.shape
    C_out, C_in_w, kh, kw = conv_w.shape
    if C_in_w != C_in:
        raise ValueError("conv_w channel mismatch")

    H_out = (H + 2 * padding - dilation * (kh - 1) - 1) // stride + 1
    W_out = (W + 2 * padding - dilation * (kw - 1) - 1) // stride + 1

    # --- static tiling choices ------------------------------------------------
    # Narrow layers: keep C_out unpadded (masked stores beat 128-lane HBM
    # write amplification); wide layers: lane-dense 128 padding.
    C_lane = C_out if C_out <= 64 else _round_up(C_out, 128)

    vmem_cap = _vmem_capacity_bytes()
    target_rows = 1024 if vmem_cap >= (96 << 20) else 512   # v5e/v6e vs v7x
    th = max(1, min(H_out, target_rows // max(1, W_out)))
    n_hb = _cdiv(H_out, th)
    if N == 1 and n_hb < 2 and H_out > 1:      # keep >=2 parallel steps (2 TCs)
        th = _cdiv(H_out, 2)
        n_hb = _cdiv(H_out, th)
    H_out_pad = n_hb * th

    # Fold kw taps into the contraction when C_in is small (MXU K utilization).
    fold_kw = (C_in * kw) <= 256

    # --- NHWC bf16 padded input (NO full im2col in HBM) ------------------------
    x_nhwc = jnp.transpose(x, (0, 2, 3, 1)).astype(jnp.bfloat16)
    need_h = (H_out_pad - 1) * stride + dilation * (kh - 1) + 1
    pad_top = padding
    pad_bottom = max(padding, need_h - H - pad_top)
    need_w = (W_out - 1) * stride + dilation * (kw - 1) + 1
    pad_left = padding
    pad_right = max(padding, need_w - W - pad_left)
    x_pad = jnp.pad(x_nhwc,
                    ((0, 0), (pad_top, pad_bottom), (pad_left, pad_right), (0, 0)))
    H_pad = H + pad_top + pad_bottom

    if fold_kw:
        # kw-only gather: x_in[n, h, ow, j*C_in + c] = x_pad[n, h, ow*s + j*d, c]
        taps = [x_pad[:, :, j * dilation: j * dilation + (W_out - 1) * stride + 1: stride, :]
                for j in range(kw)]
        x_in = jnp.concatenate(taps, axis=-1)      # (N, H_pad, W_out, kw*C_in)
    else:
        x_in = x_pad                               # (N, H_pad, W_pad, C_in)

    # --- BN folded into f32 scale/shift (applied in the epilogue) --------------
    scale = (bn_gamma / jnp.sqrt(bn_var + eps)).astype(jnp.float32)   # [C_out]
    shift = (bn_beta - bn_mean * scale).astype(jnp.float32)          # [C_out]
    scale_row = jnp.pad(scale, (0, C_lane - C_out)).reshape(1, C_lane)
    shift_row = jnp.pad(shift, (0, C_lane - C_out)).reshape(1, C_lane)

    # --- weights: (kh, kw, C_in, C_out) -> blocked bf16 ------------------------
    w_t = jnp.transpose(conv_w, (2, 3, 1, 0))                        # (kh,kw,Cin,Cout)
    w_t = jnp.pad(w_t, ((0, 0), (0, 0), (0, 0), (0, C_lane - C_out)))
    w_t = w_t.astype(jnp.bfloat16)
    if fold_kw:
        w_blocked = w_t.reshape(kh, kw * C_in, C_lane)
        kernel = _make_kernel_folded(kh, th, W_out, kw * C_in, C_lane,
                                     stride, dilation)
    else:
        w_blocked = w_t.reshape(kh * kw, C_in, C_lane)
        kernel = _make_kernel_taps(kh, kw, th, W_out, C_in, C_lane,
                                   stride, dilation)

    # --- VMEM budget (double-buffered blocks) + cost estimate ------------------
    x_blk = _vmem_padded_bytes((1,) + x_in.shape[1:], jnp.bfloat16)
    w_blk = _vmem_padded_bytes(w_blocked.shape, jnp.bfloat16)
    s_blk = 2 * _vmem_padded_bytes((1, C_lane), jnp.float32)
    o_blk = _vmem_padded_bytes((1, th, W_out, C_lane), jnp.bfloat16)
    acc_b = _vmem_padded_bytes((th * W_out, C_lane), jnp.float32)
    vmem_need = 2 * (x_blk + w_blk + s_blk + o_blk) + acc_b + (1 << 20)
    vmem_limit = int(min(vmem_cap * 3 // 4, max(2 * vmem_need, 16 << 20)))

    flops = 2 * N * H_out * W_out * C_in * kh * kw * C_out
    bytes_accessed = (x_in.size * 2 + w_blocked.size * 2 + 2 * C_lane * 4
                      + N * H_out_pad * W_out * C_lane * 2)

    out_nhwc = pl.pallas_call(
        kernel,
        out_shape=jax.ShapeDtypeStruct((N, H_out_pad, W_out, C_lane),
                                       jnp.bfloat16),
        grid=(N, n_hb),
        in_specs=[
            # Full padded image per sample; block index changes only with n,
            # so Pallas keeps it resident across the inner h-tile loop.
            pl.BlockSpec((1,) + x_in.shape[1:], lambda n, hb: (n, 0, 0, 0)),
            pl.BlockSpec(w_blocked.shape, lambda n, hb: (0, 0, 0)),
            pl.BlockSpec((1, C_lane), lambda n, hb: (0, 0)),
            pl.BlockSpec((1, C_lane), lambda n, hb: (0, 0)),
        ],
        out_specs=pl.BlockSpec((1, th, W_out, C_lane),
                               lambda n, hb: (n, hb, 0, 0)),
        scratch_shapes=[pltpu.VMEM((th * W_out, C_lane), jnp.float32)],
        compiler_params=pltpu.CompilerParams(
            dimension_semantics=("parallel", "parallel"),
            vmem_limit_bytes=vmem_limit),
        cost_estimate=pl.CostEstimate(flops=flops, transcendentals=0,
                                      bytes_accessed=bytes_accessed),
    )(x_in, w_blocked, scale_row, shift_row)

    # Drop row / channel padding; optionally skip the NCHW transpose.
    out = out_nhwc[:, :H_out, :, :C_out]
    if out_layout == "NHWC":
        return out.astype(out_dtype)
    return jnp.transpose(out, (0, 3, 1, 2)).astype(out_dtype)


# ------------------------------ reference ----------------------------------- #
def _reference(x, conv_w, gamma, beta, mean, var, stride, padding, dilation,
               eps=1e-5):
    y = jax.lax.conv_general_dilated(
        x, conv_w,
        window_strides=(stride, stride),
        padding=[(padding, padding), (padding, padding)],
        rhs_dilation=(dilation, dilation),
        dimension_numbers=("NCHW", "OIHW", "NCHW"),
    )
    s = (gamma / jnp.sqrt(var + eps)).reshape(1, -1, 1, 1)
    b = (beta - mean * gamma / jnp.sqrt(var + eps)).reshape(1, -1, 1, 1)
    return jnp.maximum(y * s + b, 0.0)


if __name__ == "__main__":
    # Small shapes consistent with BasicConv2d(in_planes=4, out_planes=8,
    # kernel_size=3, stride=1, padding=1, dilation=1).
    N, C_in, H, W = 2, 4, 16, 16
    C_out, kh, kw = 8, 3, 3
    stride, padding, dilation = 1, 1, 1

    key = jax.random.PRNGKey(0)
    kx, kw_, kg, kb, km, kv = jax.random.split(key, 6)

    x = jax.random.normal(kx, (N, C_in, H, W), dtype=jnp.float32)
    conv_w = jax.random.normal(kw_, (C_out, C_in, kh, kw), dtype=jnp.float32) * 0.1
    bn_gamma = 1.0 + 0.1 * jax.random.normal(kg, (C_out,), dtype=jnp.float32)
    bn_beta = 0.1 * jax.random.normal(kb, (C_out,), dtype=jnp.float32)
    bn_mean = 0.1 * jax.random.normal(km, (C_out,), dtype=jnp.float32)
    bn_var = jnp.abs(jax.random.normal(kv, (C_out,), dtype=jnp.float32)) + 0.5

    out = basic_conv2d(x, conv_w, bn_gamma, bn_beta, bn_mean, bn_var,
                       stride=stride, padding=padding, dilation=dilation)
    out = jax.block_until_ready(out)

    ref = _reference(x, conv_w, bn_gamma, bn_beta, bn_mean, bn_var,
                     stride, padding, dilation)
    assert out.shape == (N, C_out, H, W), out.shape
    assert out.dtype == jnp.float32, out.dtype
    # bf16 MXU operands + bf16 kernel output -> widened tolerance vs f32 ref.
    assert jnp.allclose(out, ref, atol=2e-2, rtol=2e-2), "mismatch vs reference"

    print("KERNEL_OK")
</pallas_src>

<mosaic_0001>
module attributes {stable_mosaic.version = 11 : i64} {
  func.func @kernel(%arg0: i32, %arg1: i32, %arg2: memref<1x18x16x12xbf16, #tpu.memory_space<vmem>>, %arg3: memref<3x12x8xbf16, #tpu.memory_space<vmem>>, %arg4: memref<1x8xf32, #tpu.memory_space<vmem>>, %arg5: memref<1x8xf32, #tpu.memory_space<vmem>>, %arg6: memref<1x16x16x8xbf16, #tpu.memory_space<vmem>>, %arg7: memref<256x8xf32, #tpu.memory_space<vmem>>) attributes {dimension_semantics = [#tpu.dimension_semantics<parallel>, #tpu.dimension_semantics<parallel>], iteration_bounds = array<i64: 2, 1>, scalar_prefetch = 0 : i64, scratch_operands = 1 : i64, tpu.core_type = #tpu.core_type<tc>, window_params = [{transform_indices = @transform_0, window_bounds = array<i64: 1, 18, 16, 12>}, {pipeline_mode = #tpu.pipeline_mode<synchronous>, transform_indices = @transform_1, window_bounds = array<i64: 3, 12, 8>}, {pipeline_mode = #tpu.pipeline_mode<synchronous>, transform_indices = @transform_2, window_bounds = array<i64: 1, 8>}, {pipeline_mode = #tpu.pipeline_mode<synchronous>, transform_indices = @transform_3, window_bounds = array<i64: 1, 8>}, {transform_indices = @transform_4, window_bounds = array<i64: 1, 16, 16, 8>}]} {
    %c16_i32 = arith.constant 16 : i32
    %0 = arith.muli %arg1, %c16_i32 : i32
    %1 = tpu.assume_multiple %0, 16 : i32
    %c0_i32 = arith.constant 0 : i32
    %2 = arith.addi %1, %c0_i32 : i32
    %c0 = arith.constant 0 : index
    %3 = arith.index_cast %2 : i32 to index
    %c0_0 = arith.constant 0 : index
    %c0_1 = arith.constant 0 : index
    %4 = vector.load %arg2[%c0, %3, %c0_0, %c0_1] : memref<1x18x16x12xbf16, #tpu.memory_space<vmem>>, vector<1x16x16x12xbf16>
    %5 = vector.shape_cast %4 : vector<1x16x16x12xbf16> to vector<16x16x12xbf16>
    %6 = vector.shape_cast %5 : vector<16x16x12xbf16> to vector<256x12xbf16>
    %c0_2 = arith.constant 0 : index
    %c0_3 = arith.constant 0 : index
    %c0_4 = arith.constant 0 : index
    %7 = vector.load %arg3[%c0_2, %c0_3, %c0_4] : memref<3x12x8xbf16, #tpu.memory_space<vmem>>, vector<1x12x8xbf16>
    %8 = vector.shape_cast %7 : vector<1x12x8xbf16> to vector<12x8xbf16>
    %cst = arith.constant dense<0.000000e+00> : vector<256x8xf32>
    %9 = tpu.matmul %6, %8, %cst {dimension_numbers = #tpu.dot_dimension_numbers<[1], [0], [0], [1], [0, 0, 1, 1], [], []>} : vector<256x12xbf16>, vector<12x8xbf16>, vector<256x8xf32> -> vector<256x8xf32>
    %c0_5 = arith.constant 0 : index
    %c0_6 = arith.constant 0 : index
    %10 = vector.load %arg7[%c0_5, %c0_6] : memref<256x8xf32, #tpu.memory_space<vmem>>, vector<256x8xf32>
    tpu.vector_store %arg7[%c0_5, %c0_6], %9 {strides = array<i32>} : memref<256x8xf32, #tpu.memory_space<vmem>>, vector<256x8xf32>,
    %c1_i32 = arith.constant 1 : i32
    %11 = arith.addi %1, %c1_i32 : i32
    %c0_7 = arith.constant 0 : index
    %12 = arith.index_cast %11 : i32 to index
    %c0_8 = arith.constant 0 : index
    %c0_9 = arith.constant 0 : index
    %13 = vector.load %arg2[%c0_7, %12, %c0_8, %c0_9] : memref<1x18x16x12xbf16, #tpu.memory_space<vmem>>, vector<1x16x16x12xbf16>
    %14 = vector.shape_cast %13 : vector<1x16x16x12xbf16> to vector<16x16x12xbf16>
    %15 = vector.shape_cast %14 : vector<16x16x12xbf16> to vector<256x12xbf16>
    %c1 = arith.constant 1 : index
    %c0_10 = arith.constant 0 : index
    %c0_11 = arith.constant 0 : index
    %16 = vector.load %arg3[%c1, %c0_10, %c0_11] : memref<3x12x8xbf16, #tpu.memory_space<vmem>>, vector<1x12x8xbf16>
    %17 = vector.shape_cast %16 : vector<1x12x8xbf16> to vector<12x8xbf16>
    %cst_12 = arith.constant dense<0.000000e+00> : vector<256x8xf32>
    %18 = tpu.matmul %15, %17, %cst_12 {dimension_numbers = #tpu.dot_dimension_numbers<[1], [0], [0], [1], [0, 0, 1, 1], [], []>} : vector<256x12xbf16>, vector<12x8xbf16>, vector<256x8xf32> -> vector<256x8xf32>
    %c0_13 = arith.constant 0 : index
    %c0_14 = arith.constant 0 : index
    %19 = vector.load %arg7[%c0_13, %c0_14] : memref<256x8xf32, #tpu.memory_space<vmem>>, vector<256x8xf32>
    %20 = arith.addf %19, %18 : vector<256x8xf32>
    %c0_15 = arith.constant 0 : index
    %c0_16 = arith.constant 0 : index
    %21 = vector.load %arg7[%c0_15, %c0_16] : memref<256x8xf32, #tpu.memory_space<vmem>>, vector<256x8xf32>
    tpu.vector_store %arg7[%c0_15, %c0_16], %20 {strides = array<i32>} : memref<256x8xf32, #tpu.memory_space<vmem>>, vector<256x8xf32>,
    %c2_i32 = arith.constant 2 : i32
    %22 = arith.addi %1, %c2_i32 : i32
    %c0_17 = arith.constant 0 : index
    %23 = arith.index_cast %22 : i32 to index
    %c0_18 = arith.constant 0 : index
    %c0_19 = arith.constant 0 : index
    %24 = vector.load %arg2[%c0_17, %23, %c0_18, %c0_19] : memref<1x18x16x12xbf16, #tpu.memory_space<vmem>>, vector<1x16x16x12xbf16>
    %25 = vector.shape_cast %24 : vector<1x16x16x12xbf16> to vector<16x16x12xbf16>
    %26 = vector.shape_cast %25 : vector<16x16x12xbf16> to vector<256x12xbf16>
    %c2 = arith.constant 2 : index
    %c0_20 = arith.constant 0 : index
    %c0_21 = arith.constant 0 : index
    %27 = vector.load %arg3[%c2, %c0_20, %c0_21] : memref<3x12x8xbf16, #tpu.memory_space<vmem>>, vector<1x12x8xbf16>
    %28 = vector.shape_cast %27 : vector<1x12x8xbf16> to vector<12x8xbf16>
    %cst_22 = arith.constant dense<0.000000e+00> : vector<256x8xf32>
    %29 = tpu.matmul %26, %28, %cst_22 {dimension_numbers = #tpu.dot_dimension_numbers<[1], [0], [0], [1], [0, 0, 1, 1], [], []>} : vector<256x12xbf16>, vector<12x8xbf16>, vector<256x8xf32> -> vector<256x8xf32>
    %c0_23 = arith.constant 0 : index
    %c0_24 = arith.constant 0 : index
    %30 = vector.load %arg7[%c0_23, %c0_24] : memref<256x8xf32, #tpu.memory_space<vmem>>, vector<256x8xf32>
    %31 = arith.addf %30, %29 : vector<256x8xf32>
    %c0_25 = arith.constant 0 : index
    %c0_26 = arith.constant 0 : index
    %32 = vector.load %arg7[%c0_25, %c0_26] : memref<256x8xf32, #tpu.memory_space<vmem>>, vector<256x8xf32>
    tpu.vector_store %arg7[%c0_25, %c0_26], %31 {strides = array<i32>} : memref<256x8xf32, #tpu.memory_space<vmem>>, vector<256x8xf32>,
    %c0_27 = arith.constant 0 : index
    %c0_28 = arith.constant 0 : index
    %33 = vector.load %arg7[%c0_27, %c0_28] : memref<256x8xf32, #tpu.memory_space<vmem>>, vector<256x8xf32>
    %c0_29 = arith.constant 0 : index
    %c0_30 = arith.constant 0 : index
    %34 = vector.load %arg4[%c0_29, %c0_30] : memref<1x8xf32, #tpu.memory_space<vmem>>, vector<1x8xf32>
    %35 = vector.broadcast %34 : vector<1x8xf32> to vector<256x8xf32>
    %36 = arith.mulf %33, %35 : vector<256x8xf32>
    %c0_31 = arith.constant 0 : index
    %c0_32 = arith.constant 0 : index
    %37 = vector.load %arg5[%c0_31, %c0_32] : memref<1x8xf32, #tpu.memory_space<vmem>>, vector<1x8xf32>
    %38 = vector.broadcast %37 : vector<1x8xf32> to vector<256x8xf32>
    %39 = arith.addf %36, %38 : vector<256x8xf32>
    %cst_33 = arith.constant 0.000000e+00 : f32
    %40 = vector.broadcast %cst_33 : f32 to vector<256x8xf32>
    %41 = arith.maximumf %39, %40 : vector<256x8xf32>
    %42 = vector.shape_cast %41 : vector<256x8xf32> to vector<1x16x16x8xf32>
    %43 = arith.truncf %42 : vector<1x16x16x8xf32> to vector<1x16x16x8xbf16>
    %c0_34 = arith.constant 0 : index
    %c0_35 = arith.constant 0 : index
    %c0_36 = arith.constant 0 : index
    %c0_37 = arith.constant 0 : index
    %44 = vector.load %arg6[%c0_34, %c0_35, %c0_36, %c0_37] : memref<1x16x16x8xbf16, #tpu.memory_space<vmem>>, vector<1x16x16x8xbf16>
    tpu.vector_store %arg6[%c0_34, %c0_35, %c0_36, %c0_37], %43 {strides = array<i32>} : memref<1x16x16x8xbf16, #tpu.memory_space<vmem>>, vector<1x16x16x8xbf16>,
    return
  }
  func.func @transform_0(%arg0: i32, %arg1: i32) -> (i32, i32, i32, i32) {
    %c0_i32 = arith.constant 0 : i32
    %c0_i32_0 = arith.constant 0 : i32
    %c0_i32_1 = arith.constant 0 : i32
    %c0_i32_2 = arith.constant 0 : i32
    return %arg0, %c0_i32, %c0_i32_0, %c0_i32_1 : i32, i32, i32, i32
  }
  func.func @transform_1(%arg0: i32, %arg1: i32) -> (i32, i32, i32) {
    %c0_i32 = arith.constant 0 : i32
    %c0_i32_0 = arith.constant 0 : i32
    %c0_i32_1 = arith.constant 0 : i32
    %c0_i32_2 = arith.constant 0 : i32
    return %c0_i32, %c0_i32_0, %c0_i32_1 : i32, i32, i32
  }
  func.func @transform_2(%arg0: i32, %arg1: i32) -> (i32, i32) {
    %c0_i32 = arith.constant 0 : i32
    %c0_i32_0 = arith.constant 0 : i32
    %c0_i32_1 = arith.constant 0 : i32
    return %c0_i32, %c0_i32_0 : i32, i32
  }
  func.func @transform_3(%arg0: i32, %arg1: i32) -> (i32, i32) {
    %c0_i32 = arith.constant 0 : i32
    %c0_i32_0 = arith.constant 0 : i32
    %c0_i32_1 = arith.constant 0 : i32
    return %c0_i32, %c0_i32_0 : i32, i32
  }
  func.func @transform_4(%arg0: i32, %arg1: i32) -> (i32, i32, i32, i32) {
    %c0_i32 = arith.constant 0 : i32
    %c0_i32_0 = arith.constant 0 : i32
    %c0_i32_1 = arith.constant 0 : i32
    return %arg0, %arg1, %c0_i32, %c0_i32_0 : i32, i32, i32, i32
  }
}

</mosaic_0001>

<llo_original>
// kernel: basic_conv2d.1
$region0: #{basic_conv2d.1}
  #allocation0 [shape = 'u32[]', space=smem, size = 0x4, offset = 0x4, fixed_abs, tag = 'smem constant byte address 0x4 - core index']
  #allocation1 [shape = 'u32[72,128]{1,0:T(1,128)}', space=vmem, size = 0x9000, scoped, tag = 'internal scratch']
  #allocation2 [shape = 'f32[256,8]{1,0:T(8,128)}', space=vmem, size = 0x20000, scoped, tag = 'scratch operand']
  %s0 = inlined_call_operand.vmem [shape: bf16[2,18,16,12], index: 0, kind: input, shape index: {}]
  %s1 = inlined_call_operand.vmem [shape: bf16[3,12,8], index: 1, kind: input, shape index: {}]
  %s2 = inlined_call_operand.vmem [shape: f32[1,8], index: 2, kind: input, shape index: {}]
  %s3 = inlined_call_operand.vmem [shape: f32[1,8], index: 3, kind: input, shape index: {}]
  %s4 = inlined_call_operand.vmem [shape: bf16[2,16,16,8], index: 4, kind: output, shape index: {}]
  %s5 = sld [smem:[#allocation0]]
  $region49: #{basic_conv2d.1} parent=0
    _
  %s7 = ssub.s32 1, %s5
  %s8 = scalar_select 0, %s7, %s5
  loop: start=0, step=1, limit=4
  $region2: #{basic_conv2d.1} parent=0 // loop_pre_header
    _
  $region3: #{basic_conv2d.1} parent=0 // loop_header
    %s10 = sphi 0, %s14
    %p11 = scmp.ge.s32.totalorder %s10, 4
    %s17 = sphi 0, %s29
    %s18 = sphi 0, %s25
    %s19 = sphi 0, %s17
    %s20 = sphi 0, %s18
    %s21 = sphi 0, %s19
    %s22 = sphi 0, %s20
    %s32 = sphi 0, %s34
    %s35 = sphi 0, %s32
    %s36 = sphi 0, %s35
    %s52 = sphi 0, %s36
    %s56 = sphi 0, %s56
    %s58 = sphi 0, %s56
    %s59 = sphi 0, %s58
    %s73 = sphi 0, %s59
    %s77 = sphi 0, %s77
    %s79 = sphi 0, %s77
    %s80 = sphi 0, %s79
    %s94 = sphi 0, %s80
    %s98 = sphi 0, %s98
    %s100 = sphi 0, %s98
    %s101 = sphi 0, %s100
    %s115 = sphi 0, %s101
    %s123 = sphi 0, %s125
    %s126 = sphi 0, %s123
    %s127 = sphi 0, %s126
    %s143 = sphi 0, %s127
  $region4: #{basic_conv2d.1} parent=0 // loop_header_branch
    %13 = sbr.rel (%p11) target = $region8
  $region5: #{basic_conv2d.1} parent=0 // loop_body
    %s15 = ssub.s32 %s10, 1
    %s16 = ssub.s32 %s10, 2
    %s23 = sadd.s32 1, %s18
    %p24 = scmp.ge.s32.totalorder %s23, 1
    %s25 = scalar_select %p24, 0, %s23
    %s26 = sadd.s32 1, %s17
    %s27 = scalar_select %p24, %s26, %s17
    %p28 = scmp.ge.s32.totalorder %s27, 2
    %s29 = scalar_select %p28, 0, %s27
    %s30 = ssub.s32 %s17, %s29
    %p31 = scmp.eq.s32.totalorder %s30, 0
    %s33 = sadd.s32 %s32, 1
    %s34 = scalar_select %p31, %s32, %s33
    %p37 = pneg %p31
    %p38 = scmp.eq.s32.totalorder %s10, 1
    %p39 = por %p37, %p38
    %p40 = scmp.ne.s32.totalorder %s32, %s35
    %p41 = scmp.eq.s32.totalorder %s10, 0
    %p42 = por %p40, %p41
    %p43 = scmp.ne.s32.totalorder %s32, %s35
    %p44 = scmp.eq.s32.totalorder %s15, 1
    %p45 = por %p43, %p44
    %p46 = scmp.ne.s32.totalorder %s35, %s36
    %p47 = scmp.eq.s32.totalorder %s15, 0
    %p48 = por %p46, %p47
    %p49 = scmp.ne.s32.totalorder %s35, %s36
    %p50 = scmp.eq.s32.totalorder %s16, 1
    %p51 = por %p49, %p50
    %p53 = scmp.ne.s32.totalorder %s36, %s52
    %p54 = scmp.eq.s32.totalorder %s16, 0
    %p55 = por %p53, %p54
    %s57 = sadd.s32 %s56, 1
    %p60 = scmp.eq.s32.totalorder %s10, 1
    %p61 = scmp.ne.s32.totalorder %s56, %s58
    %p62 = scmp.eq.s32.totalorder %s10, 0
    %p63 = por %p61, %p62
    %p64 = scmp.ne.s32.totalorder %s56, %s58
    %p65 = scmp.eq.s32.totalorder %s15, 1
    %p66 = por %p64, %p65
    %p67 = scmp.ne.s32.totalorder %s58, %s59
    %p68 = scmp.eq.s32.totalorder %s15, 0
    %p69 = por %p67, %p68
    %p70 = scmp.ne.s32.totalorder %s58, %s59
    %p71 = scmp.eq.s32.totalorder %s16, 1
    %p72 = por %p70, %p71
    %p74 = scmp.ne.s32.totalorder %s59, %s73
    %p75 = scmp.eq.s32.totalorder %s16, 0
    %p76 = por %p74, %p75
    %s78 = sadd.s32 %s77, 1
    %p81 = scmp.eq.s32.totalorder %s10, 1
    %p82 = scmp.ne.s32.totalorder %s77, %s79
    %p83 = scmp.eq.s32.totalorder %s10, 0
    %p84 = por %p82, %p83
    %p85 = scmp.ne.s32.totalorder %s77, %s79
    %p86 = scmp.eq.s32.totalorder %s15, 1
    %p87 = por %p85, %p86
    %p88 = scmp.ne.s32.totalorder %s79, %s80
    %p89 = scmp.eq.s32.totalorder %s15, 0
    %p90 = por %p88, %p89
    %p91 = scmp.ne.s32.totalorder %s79, %s80
    %p92 = scmp.eq.s32.totalorder %s16, 1
    %p93 = por %p91, %p92
    %p95 = scmp.ne.s32.totalorder %s80, %s94
    %p96 = scmp.eq.s32.totalorder %s16, 0
    %p97 = por %p95, %p96
    %s99 = sadd.s32 %s98, 1
    %p102 = scmp.eq.s32.totalorder %s10, 1
    %p103 = scmp.ne.s32.totalorder %s98, %s100
    %p104 = scmp.eq.s32.totalorder %s10, 0
    %p105 = por %p103, %p104
    %p106 = scmp.ne.s32.totalorder %s98, %s100
    %p107 = scmp.eq.s32.totalorder %s15, 1
    %p108 = por %p106, %p107
    %p109 = scmp.ne.s32.totalorder %s100, %s101
    %p110 = scmp.eq.s32.totalorder %s15, 0
    %p111 = por %p109, %p110
    %p112 = scmp.ne.s32.totalorder %s100, %s101
    %p113 = scmp.eq.s32.totalorder %s16, 1
    %p114 = por %p112, %p113
    %p116 = scmp.ne.s32.totalorder %s101, %s115
    %p117 = scmp.eq.s32.totalorder %s16, 0
    %p118 = por %p116, %p117
    %s119 = ssub.s32 %s17, %s29
    %s120 = ssub.s32 %s18, %s25
    %s121 = sor.u32 %s119, %s120
    %p122 = scmp.eq.s32.totalorder %s121, 0
    %s124 = sadd.s32 %s123, 1
    %s125 = scalar_select %p122, %s123, %s124
    %p128 = pneg %p122
    %p129 = scmp.eq.s32.totalorder %s10, 1
    %p130 = por %p128, %p129
    %p131 = scmp.ne.s32.totalorder %s123, %s126
    %p132 = scmp.eq.s32.totalorder %s10, 0
    %p133 = por %p131, %p132
    %p134 = scmp.ne.s32.totalorder %s123, %s126
    %p135 = scmp.eq.s32.totalorder %s15, 1
    %p136 = por %p134, %p135
    %p137 = scmp.ne.s32.totalorder %s126, %s127
    %p138 = scmp.eq.s32.totalorder %s15, 0
    %p139 = por %p137, %p138
    %p140 = scmp.ne.s32.totalorder %s126, %s127
    %p141 = scmp.eq.s32.totalorder %s16, 1
    %p142 = por %p140, %p141
    %p144 = scmp.ne.s32.totalorder %s127, %s143
    %p145 = scmp.eq.s32.totalorder %s16, 0
    %p146 = por %p144, %p145
    %p147 = scmp.le.s32.totalorder 1, %s10
    %p148 = scmp.lt.s32.totalorder %s10, 3
    %p149 = pnand %p147, %p148
    %p150 = pneg %p149
    // Predicated region
    $region9: #{basic_conv2d.1} parent=5 // pred_check
      _
    $region10: #{basic_conv2d.1} parent=5 // pred_check_branch
      %152 = sbr.rel (%p149) target = $region12
    $region11: #{basic_conv2d.1} parent=5 // pred_region
      %s153 = ssub.s32 %s10, 1
      // Predicated region
      $region13: #{basic_conv2d.1} parent=11 // pred_check
        %p154 = pneg %p69
      $region14: #{basic_conv2d.1} parent=11 // pred_check_branch
        %156 = sbr.rel (%p154) target = $region16
      $region15: #{basic_conv2d.1} parent=11 // pred_region
        _
      $region16: #{basic_conv2d.1} parent=11 // pred_fallthru
        _
      // Predicated region
      $region17: #{basic_conv2d.1} parent=11 // pred_check
        %p157 = pneg %p90
      $region18: #{basic_conv2d.1} parent=11 // pred_check_branch
        %159 = sbr.rel (%p157) target = $region20
      $region19: #{basic_conv2d.1} parent=11 // pred_region
        _
      $region20: #{basic_conv2d.1} parent=11 // pred_fallthru
        _
      // Predicated region
      $region21: #{basic_conv2d.1} parent=11 // pred_check
        %p160 = pneg %p111
      $region22: #{basic_conv2d.1} parent=11 // pred_check_branch
        %162 = sbr.rel (%p160) target = $region24
      $region23: #{basic_conv2d.1} parent=11 // pred_region
        _
      $region24: #{basic_conv2d.1} parent=11 // pred_fallthru
        _
    $region12: #{basic_conv2d.1} parent=5 // pred_fallthru
      _
    %p163 = scmp.lt.s32.totalorder %s10, 2
    // Predicated region
    $region25: #{basic_conv2d.1} parent=5 // pred_check
      %p164 = pneg %p163
    $region26: #{basic_conv2d.1} parent=5 // pred_check_branch
      %166 = sbr.rel (%p164) target = $region28
    $region27: #{basic_conv2d.1} parent=5 // pred_region
      // Predicated region
      $region29: #{basic_conv2d.1} parent=27 // pred_check
        %p167 = pneg %p42
      $region30: #{basic_conv2d.1} parent=27 // pred_check_branch
        %169 = sbr.rel (%p167) target = $region32
      $region31: #{basic_conv2d.1} parent=27 // pred_region
        %p170 = scmp.lt.s32.totalorder %s17, 1
        %s171 = scalar_select %p170, %s17, 1
        %s172 = smul.addr %s171, 36
        %s173 = smul.addr %s172, 4
        %s174 = scalar_lea.vmem %s0, %s173
      $region32: #{basic_conv2d.1} parent=27 // pred_fallthru
        _
    $region28: #{basic_conv2d.1} parent=5 // pred_fallthru
      _
    %p175 = scmp.le.s32.totalorder 1, %s10
    %p176 = scmp.lt.s32.totalorder %s10, 3
    %p177 = pnand %p175, %p176
    %p178 = pneg %p177
    // Predicated region
    $region33: #{basic_conv2d.1} parent=5 // pred_check
      _
    $region34: #{basic_conv2d.1} parent=5 // pred_check_branch
      %180 = sbr.rel (%p177) target = $region36
    $region35: #{basic_conv2d.1} parent=5 // pred_region
      %s181 = ssub.s32 %s10, 1
      %p182 = scmp.lt.s32.totalorder %s19, 1
      %s183 = scalar_select %p182, %s19, 1
      %s184 = smul.addr %s183, 36
      %s185 = smul.addr %s184, 4
      %s186 = scalar_lea.vmem %s0, %s185
      %p187 = pneg %p48
      %p188 = pneg %p45
      %p189 = pneg %p69
      %p190 = pneg %p66
      %p191 = pneg %p90
      %p192 = pneg %p87
      %p193 = pneg %p111
      %p194 = pneg %p108
      %p195 = pneg %p139
      %p196 = pneg %p136
      %s197 = smul.u32 16, %s20
      %p198 = scmp.lt.s32.totalorder %s19, 1
      %s199 = scalar_select %p198, %s19, 1
      %p200 = scmp.lt.s32.totalorder %s197, 15
      %s201 = scalar_select %p200, %s197, 15
      %s202 = smul.addr %s201, 2
      %s203 = smul.addr %s199, 32
      %s204 = sadd.s32 %s202, %s203
      %s205 = smul.addr %s204, 4
      %s206 = scalar_lea.vmem %s4, %s205
      %p207 = scmp.lt.s32.totalorder %s19, 1
      %s208 = scalar_select %p207, %s19, 1
      %s209 = smul.addr %s208, 36
      %s210 = smul.addr %s209, 4
      %s211 = scalar_lea.vmem %s0, %s210
      %s212 = smul.u32 16, %s20
      %p213 = scmp.lt.s32.totalorder %s19, 1
      %s214 = scalar_select %p213, %s19, 1
      %p215 = scmp.lt.s32.totalorder %s212, 15
      %s216 = scalar_select %p215, %s212, 15
      %s217 = smul.addr %s216, 2
      %s218 = smul.addr %s214, 32
      %s219 = sadd.s32 %s217, %s218
      %s220 = smul.addr %s219, 4
      %s221 = scalar_lea.vmem %s4, %s220
      %s222 = smul.u32 16, %s20
      %s224 = smul.u32 %s20, 16
      %s225 = smul.u32 %s224, 2
      %s226 = smul.addr %s225, 4
      %s227 = scalar_lea.vmem %s211, %s226
      %v228 = vld [vmem:[%s227] sm:$0xf]
      %v229 = vld [vmem:[%s227 + $0x4] sm:$0xf]
      %v230 = vld [vmem:[%s227 + $0x8] sm:$0xf]
      %v231 = vld [vmem:[%s227 + $0xc] sm:$0xf]
      %v232 = vld [vmem:[%s227 + $0x10] sm:$0xf]
      %v233 = vld [vmem:[%s227 + $0x14] sm:$0xf]
      %v234 = vld [vmem:[%s227 + $0x18] sm:$0xf]
      %v235 = vld [vmem:[%s227 + $0x1c] sm:$0xf]
      %v236 = vld [vmem:[%s227 + $0x20] sm:$0xf]
      %v237 = vld [vmem:[%s227 + $0x24] sm:$0xf]
      %v238 = vld [vmem:[%s227 + $0x28] sm:$0xf]
      %v239 = vld [vmem:[%s227 + $0x2c] sm:$0xf]
      %v240 = vld [vmem:[%s227 + $0x30] sm:$0xf]
      %v241 = vld [vmem:[%s227 + $0x34] sm:$0xf]
      %v242 = vld [vmem:[%s227 + $0x38] sm:$0xf]
      %v243 = vld [vmem:[%s227 + $0x3c] sm:$0xf]
      %v244 = vld [vmem:[%s227 + $0x40] sm:$0xf]
      %v245 = vld [vmem:[%s227 + $0x44] sm:$0xf]
      %v246 = vld [vmem:[%s227 + $0x48] sm:$0xf]
      %v247 = vld [vmem:[%s227 + $0x4c] sm:$0xf]
      %v248 = vld [vmem:[%s227 + $0x50] sm:$0xf]
      %v249 = vld [vmem:[%s227 + $0x54] sm:$0xf]
      %v250 = vld [vmem:[%s227 + $0x58] sm:$0xf]
      %v251 = vld [vmem:[%s227 + $0x5c] sm:$0xf]
      %v252 = vld [vmem:[%s227 + $0x60] sm:$0xf]
      %v253 = vld [vmem:[%s227 + $0x64] sm:$0xf]
      %v254 = vld [vmem:[%s227 + $0x68] sm:$0xf]
      %v255 = vld [vmem:[%s227 + $0x6c] sm:$0xf]
      %v256 = vld [vmem:[%s227 + $0x70] sm:$0xf]
      %v257 = vld [vmem:[%s227 + $0x74] sm:$0xf]
      %v258 = vld [vmem:[%s227 + $0x78] sm:$0xf]
      %v259 = vld [vmem:[%s227 + $0x7c] sm:$0xf]
      %v260 = vld [vmem:[%s1] sm:$0xf]
      %v261 = vld [vmem:[%s1 + $0x4] sm:$0x3]
      %v294 = vunpack.c.l.b16 %v228
      %v295 = vunpack.c.l.b16 %v229
      %v296 = vunpack.c.l.b16 %v230
      %v297 = vunpack.c.l.b16 %v231
      %v298 = vunpack.c.l.b16 %v232
      %v299 = vunpack.c.l.b16 %v233
      %v300 = vunpack.c.l.b16 %v234
      %v301 = vunpack.c.l.b16 %v235
      %v302 = vunpack.c.l.b16 %v236
      %v303 = vunpack.c.l.b16 %v237
      %v304 = vunpack.c.l.b16 %v238
      %v305 = vunpack.c.l.b16 %v239
      %v306 = vunpack.c.l.b16 %v240
      %v307 = vunpack.c.l.b16 %v241
      %v308 = vunpack.c.l.b16 %v242
      %v309 = vunpack.c.l.b16 %v243
      %v310 = vunpack.c.l.b16 %v244
      %v311 = vunpack.c.l.b16 %v245
      %v312 = vunpack.c.l.b16 %v246
      %v313 = vunpack.c.l.b16 %v247
      %v314 = vunpack.c.l.b16 %v248
      %v315 = vunpack.c.l.b16 %v249
      %v316 = vunpack.c.l.b16 %v250
      %v317 = vunpack.c.l.b16 %v251
      %v318 = vunpack.c.l.b16 %v252
      %v319 = vunpack.c.l.b16 %v253
      %v320 = vunpack.c.l.b16 %v254
      %v321 = vunpack.c.l.b16 %v255
      %v322 = vunpack.c.l.b16 %v256
      %v323 = vunpack.c.l.b16 %v257
      %v324 = vunpack.c.l.b16 %v258
      %v325 = vunpack.c.l.b16 %v259
      %v326 = vpack.c.b16 %v295, %v294
      %v327 = vpack.c.b16 %v297, %v296
      %v328 = vpack.c.b16 %v299, %v298
      %v329 = vpack.c.b16 %v301, %v300
      %v330 = vpack.c.b16 %v303, %v302
      %v331 = vpack.c.b16 %v305, %v304
      %v332 = vpack.c.b16 %v307, %v306
      %v333 = vpack.c.b16 %v309, %v308
      %v334 = vpack.c.b16 %v311, %v310
      %v335 = vpack.c.b16 %v313, %v312
      %v336 = vpack.c.b16 %v315, %v314
      %v337 = vpack.c.b16 %v317, %v316
      %v338 = vpack.c.b16 %v319, %v318
      %v339 = vpack.c.b16 %v321, %v320
      %v340 = vpack.c.b16 %v323, %v322
      %v341 = vpack.c.b16 %v325, %v324
      %v344 = vunpack.c.l.b16 %v260
      %v345 = vunpack.c.l.b16 %v261
      %v346 = vpack.c.b16 %v345, %v344
      %vm347 = vcmask 97280
      %v349 = vsel %vm347, %v326, 0
      %v352 = vsel %vm347, %v327, 0
      %v355 = vsel %vm347, %v328, 0
      %v358 = vsel %vm347, %v329, 0
      %v361 = vsel %vm347, %v330, 0
      %v364 = vsel %vm347, %v331, 0
      %v367 = vsel %vm347, %v332, 0
      %v370 = vsel %vm347, %v333, 0
      %v373 = vsel %vm347, %v334, 0
      %v376 = vsel %vm347, %v335, 0
      %v379 = vsel %vm347, %v336, 0
      %v382 = vsel %vm347, %v337, 0
      %v385 = vsel %vm347, %v338, 0
      %v388 = vsel %vm347, %v339, 0
      %v391 = vsel %vm347, %v340, 0
      %v394 = vsel %vm347, %v341, 0
      %vm396 = vcmask 1045504
      %v398 = vsel %vm396, %v346, 0
      %400 = vmatpush.bf16.msra.mxu0 0
      %401 = vmatpush.bf16.msra.mxu0 0
      %402 = vmatpush.bf16.msra.mxu0 0
      %403 = vmatpush.bf16.msra.mxu0 0
      %404 = vmatpush.bf16.msra.mxu0 0
      %405 = vmatpush.bf16.msra.mxu0 0
      %406 = vmatpush.bf16.msra.mxu0 0
      %407 = vmatpush.bf16.msra.mxu0 %v398
      %408 = vmatmul.bf16.gmra.mxu0 %v349
      %v409 = vpop.f32.mrf.mxu0
      %v410 = vadd.f32 0.0, %v409
      %v411 = vpop.f32.mrf.mxu0
      %v412 = vadd.f32 0.0, %v411
      %413 = vmatmul.bf16.gmra.mxu0 %v352
      %v414 = vpop.f32.mrf.mxu0
      %v415 = vadd.f32 0.0, %v414
      %v416 = vpop.f32.mrf.mxu0
      %v417 = vadd.f32 0.0, %v416
      %418 = vmatmul.bf16.gmra.mxu0 %v355
      %v419 = vpop.f32.mrf.mxu0
      %v420 = vadd.f32 0.0, %v419
      %v421 = vpop.f32.mrf.mxu0
      %v422 = vadd.f32 0.0, %v421
      %423 = vmatmul.bf16.gmra.mxu0 %v358
      %v424 = vpop.f32.mrf.mxu0
      %v425 = vadd.f32 0.0, %v424
      %v426 = vpop.f32.mrf.mxu0
      %v427 = vadd.f32 0.0, %v426
      %428 = vmatmul.bf16.gmra.mxu0 %v361
      %v429 = vpop.f32.mrf.mxu0
      %v430 = vadd.f32 0.0, %v429
      %v431 = vpop.f32.mrf.mxu0
      %v432 = vadd.f32 0.0, %v431
      %433 = vmatmul.bf16.gmra.mxu0 %v364
      %v434 = vpop.f32.mrf.mxu0
      %v435 = vadd.f32 0.0, %v434
      %v436 = vpop.f32.mrf.mxu0
      %v437 = vadd.f32 0.0, %v436
      %438 = vmatmul.bf16.gmra.mxu0 %v367
      %v439 = vpop.f32.mrf.mxu0
      %v440 = vadd.f32 0.0, %v439
      %v441 = vpop.f32.mrf.mxu0
      %v442 = vadd.f32 0.0, %v441
      %443 = vmatmul.bf16.gmra.mxu0 %v370
      %v444 = vpop.f32.mrf.mxu0
      %v445 = vadd.f32 0.0, %v444
      %v446 = vpop.f32.mrf.mxu0
      %v447 = vadd.f32 0.0, %v446
      %448 = vmatmul.bf16.gmra.mxu0 %v373
      %v449 = vpop.f32.mrf.mxu0
      %v450 = vadd.f32 0.0, %v449
      %v451 = vpop.f32.mrf.mxu0
      %v452 = vadd.f32 0.0, %v451
      %453 = vmatmul.bf16.gmra.mxu0 %v376
      %v454 = vpop.f32.mrf.mxu0
      %v455 = vadd.f32 0.0, %v454
      %v456 = vpop.f32.mrf.mxu0
      %v457 = vadd.f32 0.0, %v456
      %458 = vmatmul.bf16.gmra.mxu0 %v379
      %v459 = vpop.f32.mrf.mxu0
      %v460 = vadd.f32 0.0, %v459
      %v461 = vpop.f32.mrf.mxu0
      %v462 = vadd.f32 0.0, %v461
      %463 = vmatmul.bf16.gmra.mxu0 %v382
      %v464 = vpop.f32.mrf.mxu0
      %v465 = vadd.f32 0.0, %v464
      %v466 = vpop.f32.mrf.mxu0
      %v467 = vadd.f32 0.0, %v466
      %468 = vmatmul.bf16.gmra.mxu0 %v385
      %v469 = vpop.f32.mrf.mxu0
      %v470 = vadd.f32 0.0, %v469
      %v471 = vpop.f32.mrf.mxu0
      %v472 = vadd.f32 0.0, %v471
      %473 = vmatmul.bf16.gmra.mxu0 %v388
      %v474 = vpop.f32.mrf.mxu0
      %v475 = vadd.f32 0.0, %v474
      %v476 = vpop.f32.mrf.mxu0
      %v477 = vadd.f32 0.0, %v476
      %478 = vmatmul.bf16.gmra.mxu0 %v391
      %v479 = vpop.f32.mrf.mxu0
      %v480 = vadd.f32 0.0, %v479
      %v481 = vpop.f32.mrf.mxu0
      %v482 = vadd.f32 0.0, %v481
      %483 = vmatmul.bf16.gmra.mxu0 %v394
      %v484 = vpop.f32.mrf.mxu0
      %v485 = vadd.f32 0.0, %v484
      %v486 = vpop.f32.mrf.mxu0
      %v487 = vadd.f32 0.0, %v486
      %488 = vdwg.mxu0
      %vm489 = vcmask 64512
      %490 = vst.msk [vmem:[#allocation2] sm:$0xff] %vm489, %v410
      %491 = vst.msk [vmem:[#allocation2 + $0x8] sm:$0xff] %vm489, %v412
      %492 = vst.msk [vmem:[#allocation2 + $0x10] sm:$0xff] %vm489, %v415
      %493 = vst.msk [vmem:[#allocation2 + $0x18] sm:$0xff] %vm489, %v417
      %494 = vst.msk [vmem:[#allocation2 + $0x20] sm:$0xff] %vm489, %v420
      %495 = vst.msk [vmem:[#allocation2 + $0x28] sm:$0xff] %vm489, %v422
      %496 = vst.msk [vmem:[#allocation2 + $0x30] sm:$0xff] %vm489, %v425
      %497 = vst.msk [vmem:[#allocation2 + $0x38] sm:$0xff] %vm489, %v427
      %498 = vst.msk [vmem:[#allocation2 + $0x40] sm:$0xff] %vm489, %v430
      %499 = vst.msk [vmem:[#allocation2 + $0x48] sm:$0xff] %vm489, %v432
      %500 = vst.msk [vmem:[#allocation2 + $0x50] sm:$0xff] %vm489, %v435
      %501 = vst.msk [vmem:[#allocation2 + $0x58] sm:$0xff] %vm489, %v437
      %502 = vst.msk [vmem:[#allocation2 + $0x60] sm:$0xff] %vm489, %v440
      %503 = vst.msk [vmem:[#allocation2 + $0x68] sm:$0xff] %vm489, %v442
      %504 = vst.msk [vmem:[#allocation2 + $0x70] sm:$0xff] %vm489, %v445
      %505 = vst.msk [vmem:[#allocation2 + $0x78] sm:$0xff] %vm489, %v447
      %506 = vst.msk [vmem:[#allocation2 + $0x80] sm:$0xff] %vm489, %v450
      %507 = vst.msk [vmem:[#allocation2 + $0x88] sm:$0xff] %vm489, %v452
      %508 = vst.msk [vmem:[#allocation2 + $0x90] sm:$0xff] %vm489, %v455
      %509 = vst.msk [vmem:[#allocation2 + $0x98] sm:$0xff] %vm489, %v457
      %510 = vst.msk [vmem:[#allocation2 + $0xa0] sm:$0xff] %vm489, %v460
      %511 = vst.msk [vmem:[#allocation2 + $0xa8] sm:$0xff] %vm489, %v462
      %512 = vst.msk [vmem:[#allocation2 + $0xb0] sm:$0xff] %vm489, %v465
      %513 = vst.msk [vmem:[#allocation2 + $0xb8] sm:$0xff] %vm489, %v467
      %514 = vst.msk [vmem:[#allocation2 + $0xc0] sm:$0xff] %vm489, %v470
      %515 = vst.msk [vmem:[#allocation2 + $0xc8] sm:$0xff] %vm489, %v472
      %516 = vst.msk [vmem:[#allocation2 + $0xd0] sm:$0xff] %vm489, %v475
      %517 = vst.msk [vmem:[#allocation2 + $0xd8] sm:$0xff] %vm489, %v477
      %518 = vst.msk [vmem:[#allocation2 + $0xe0] sm:$0xff] %vm489, %v480
      %519 = vst.msk [vmem:[#allocation2 + $0xe8] sm:$0xff] %vm489, %v482
      %520 = vst.msk [vmem:[#allocation2 + $0xf0] sm:$0xff] %vm489, %v485
      %521 = vst.msk [vmem:[#allocation2 + $0xf8] sm:$0xff] %vm489, %v487
      %s522 = sadd.s32 %s224, 1
      %s523 = smul.u32 %s522, 2
      %s524 = smul.addr %s523, 4
      %s525 = scalar_lea.vmem %s211, %s524
      %v526 = vld [vmem:[%s525] sm:$0xf]
      %v527 = vld [vmem:[%s525 + $0x4] sm:$0xf]
      %v528 = vld [vmem:[%s525 + $0x8] sm:$0xf]
      %v529 = vld [vmem:[%s525 + $0xc] sm:$0xf]
      %v530 = vld [vmem:[%s525 + $0x10] sm:$0xf]
      %v531 = vld [vmem:[%s525 + $0x14] sm:$0xf]
      %v532 = vld [vmem:[%s525 + $0x18] sm:$0xf]
      %v533 = vld [vmem:[%s525 + $0x1c] sm:$0xf]
      %v534 = vld [vmem:[%s525 + $0x20] sm:$0xf]
      %v535 = vld [vmem:[%s525 + $0x24] sm:$0xf]
      %v536 = vld [vmem:[%s525 + $0x28] sm:$0xf]
      %v537 = vld [vmem:[%s525 + $0x2c] sm:$0xf]
      %v538 = vld [vmem:[%s525 + $0x30] sm:$0xf]
      %v539 = vld [vmem:[%s525 + $0x34] sm:$0xf]
      %v540 = vld [vmem:[%s525 + $0x38] sm:$0xf]
      %v541 = vld [vmem:[%s525 + $0x3c] sm:$0xf]
      %v542 = vld [vmem:[%s525 + $0x40] sm:$0xf]
      %v543 = vld [vmem:[%s525 + $0x44] sm:$0xf]
      %v544 = vld [vmem:[%s525 + $0x48] sm:$0xf]
      %v545 = vld [vmem:[%s525 + $0x4c] sm:$0xf]
      %v546 = vld [vmem:[%s525 + $0x50] sm:$0xf]
      %v547 = vld [vmem:[%s525 + $0x54] sm:$0xf]
      %v548 = vld [vmem:[%s525 + $0x58] sm:$0xf]
      %v549 = vld [vmem:[%s525 + $0x5c] sm:$0xf]
      %v550 = vld [vmem:[%s525 + $0x60] sm:$0xf]
      %v551 = vld [vmem:[%s525 + $0x64] sm:$0xf]
      %v552 = vld [vmem:[%s525 + $0x68] sm:$0xf]
      %v553 = vld [vmem:[%s525 + $0x6c] sm:$0xf]
      %v554 = vld [vmem:[%s525 + $0x70] sm:$0xf]
      %v555 = vld [vmem:[%s525 + $0x74] sm:$0xf]
      %v556 = vld [vmem:[%s525 + $0x78] sm:$0xf]
      %v557 = vld [vmem:[%s525 + $0x7c] sm:$0xf]
      %s558 = scalar_lea.vmem %s1, 8
      %v559 = vld [vmem:[%s558] sm:$0xf]
      %v560 = vld [vmem:[%s558 + $0x4] sm:$0x3]
      %v593 = vunpack.c.l.b16 %v526
      %v594 = vunpack.c.l.b16 %v527
      %v595 = vunpack.c.l.b16 %v528
      %v596 = vunpack.c.l.b16 %v529
      %v597 = vunpack.c.l.b16 %v530
      %v598 = vunpack.c.l.b16 %v531
      %v599 = vunpack.c.l.b16 %v532
      %v600 = vunpack.c.l.b16 %v533
      %v601 = vunpack.c.l.b16 %v534
      %v602 = vunpack.c.l.b16 %v535
      %v603 = vunpack.c.l.b16 %v536
      %v604 = vunpack.c.l.b16 %v537
      %v605 = vunpack.c.l.b16 %v538
      %v606 = vunpack.c.l.b16 %v539
      %v607 = vunpack.c.l.b16 %v540
      %v608 = vunpack.c.l.b16 %v541
      %v609 = vunpack.c.l.b16 %v542
      %v610 = vunpack.c.l.b16 %v543
      %v611 = vunpack.c.l.b16 %v544
      %v612 = vunpack.c.l.b16 %v545
      %v613 = vunpack.c.l.b16 %v546
      %v614 = vunpack.c.l.b16 %v547
      %v615 = vunpack.c.l.b16 %v548
      %v616 = vunpack.c.l.b16 %v549
      %v617 = vunpack.c.l.b16 %v550
      %v618 = vunpack.c.l.b16 %v551
      %v619 = vunpack.c.l.b16 %v552
      %v620 = vunpack.c.l.b16 %v553
      %v621 = vunpack.c.l.b16 %v554
      %v622 = vunpack.c.l.b16 %v555
      %v623 = vunpack.c.l.b16 %v556
      %v624 = vunpack.c.l.b16 %v557
      %v625 = vpack.c.b16 %v594, %v593
      %v626 = vpack.c.b16 %v596, %v595
      %v627 = vpack.c.b16 %v598, %v597
      %v628 = vpack.c.b16 %v600, %v599
      %v629 = vpack.c.b16 %v602, %v601
      %v630 = vpack.c.b16 %v604, %v603
      %v631 = vpack.c.b16 %v606, %v605
      %v632 = vpack.c.b16 %v608, %v607
      %v633 = vpack.c.b16 %v610, %v609
      %v634 = vpack.c.b16 %v612, %v611
      %v635 = vpack.c.b16 %v614, %v613
      %v636 = vpack.c.b16 %v616, %v615
      %v637 = vpack.c.b16 %v618, %v617
      %v638 = vpack.c.b16 %v620, %v619
      %v639 = vpack.c.b16 %v622, %v621
      %v640 = vpack.c.b16 %v624, %v623
      %v643 = vunpack.c.l.b16 %v559
      %v644 = vunpack.c.l.b16 %v560
      %v645 = vpack.c.b16 %v644, %v643
      %v647 = vsel %vm347, %v625, 0
      %v650 = vsel %vm347, %v626, 0
      %v653 = vsel %vm347, %v627, 0
      %v656 = vsel %vm347, %v628, 0
      %v659 = vsel %vm347, %v629, 0
      %v662 = vsel %vm347, %v630, 0
      %v665 = vsel %vm347, %v631, 0
      %v668 = vsel %vm347, %v632, 0
      %v671 = vsel %vm347, %v633, 0
      %v674 = vsel %vm347, %v634, 0
      %v677 = vsel %vm347, %v635, 0
      %v680 = vsel %vm347, %v636, 0
      %v683 = vsel %vm347, %v637, 0
      %v686 = vsel %vm347, %v638, 0
      %v689 = vsel %vm347, %v639, 0
      %v692 = vsel %vm347, %v640, 0
      %v695 = vsel %vm396, %v645, 0
      %697 = vmatpush.bf16.msra.mxu0 0
      %698 = vmatpush.bf16.msra.mxu0 0
      %699 = vmatpush.bf16.msra.mxu0 0
      %700 = vmatpush.bf16.msra.mxu0 0
      %701 = vmatpush.bf16.msra.mxu0 0
      %702 = vmatpush.bf16.msra.mxu0 0
      %703 = vmatpush.bf16.msra.mxu0 0
      %704 = vmatpush.bf16.msra.mxu0 %v695
      %705 = vmatmul.bf16.gmra.mxu0 %v647
      %v706 = vpop.f32.mrf.mxu0
      %v707 = vadd.f32 0.0, %v706
      %v708 = vpop.f32.mrf.mxu0
      %v709 = vadd.f32 0.0, %v708
      %710 = vmatmul.bf16.gmra.mxu0 %v650
      %v711 = vpop.f32.mrf.mxu0
      %v712 = vadd.f32 0.0, %v711
      %v713 = vpop.f32.mrf.mxu0
      %v714 = vadd.f32 0.0, %v713
      %715 = vmatmul.bf16.gmra.mxu0 %v653
      %v716 = vpop.f32.mrf.mxu0
      %v717 = vadd.f32 0.0, %v716
      %v718 = vpop.f32.mrf.mxu0
      %v719 = vadd.f32 0.0, %v718
      %720 = vmatmul.bf16.gmra.mxu0 %v656
      %v721 = vpop.f32.mrf.mxu0
      %v722 = vadd.f32 0.0, %v721
      %v723 = vpop.f32.mrf.mxu0
      %v724 = vadd.f32 0.0, %v723
      %725 = vmatmul.bf16.gmra.mxu0 %v659
      %v726 = vpop.f32.mrf.mxu0
      %v727 = vadd.f32 0.0, %v726
      %v728 = vpop.f32.mrf.mxu0
      %v729 = vadd.f32 0.0, %v728
      %730 = vmatmul.bf16.gmra.mxu0 %v662
      %v731 = vpop.f32.mrf.mxu0
      %v732 = vadd.f32 0.0, %v731
      %v733 = vpop.f32.mrf.mxu0
      %v734 = vadd.f32 0.0, %v733
      %735 = vmatmul.bf16.gmra.mxu0 %v665
      %v736 = vpop.f32.mrf.mxu0
      %v737 = vadd.f32 0.0, %v736
      %v738 = vpop.f32.mrf.mxu0
      %v739 = vadd.f32 0.0, %v738
      %740 = vmatmul.bf16.gmra.mxu0 %v668
      %v741 = vpop.f32.mrf.mxu0
      %v742 = vadd.f32 0.0, %v741
      %v743 = vpop.f32.mrf.mxu0
      %v744 = vadd.f32 0.0, %v743
      %745 = vmatmul.bf16.gmra.mxu0 %v671
      %v746 = vpop.f32.mrf.mxu0
      %v747 = vadd.f32 0.0, %v746
      %v748 = vpop.f32.mrf.mxu0
      %v749 = vadd.f32 0.0, %v748
      %750 = vmatmul.bf16.gmra.mxu0 %v674
      %v751 = vpop.f32.mrf.mxu0
      %v752 = vadd.f32 0.0, %v751
      %v753 = vpop.f32.mrf.mxu0
      %v754 = vadd.f32 0.0, %v753
      %755 = vmatmul.bf16.gmra.mxu0 %v677
      %v756 = vpop.f32.mrf.mxu0
      %v757 = vadd.f32 0.0, %v756
      %v758 = vpop.f32.mrf.mxu0
      %v759 = vadd.f32 0.0, %v758
      %760 = vmatmul.bf16.gmra.mxu0 %v680
      %v761 = vpop.f32.mrf.mxu0
      %v762 = vadd.f32 0.0, %v761
      %v763 = vpop.f32.mrf.mxu0
      %v764 = vadd.f32 0.0, %v763
      %765 = vmatmul.bf16.gmra.mxu0 %v683
      %v766 = vpop.f32.mrf.mxu0
      %v767 = vadd.f32 0.0, %v766
      %v768 = vpop.f32.mrf.mxu0
      %v769 = vadd.f32 0.0, %v768
      %770 = vmatmul.bf16.gmra.mxu0 %v686
      %v771 = vpop.f32.mrf.mxu0
      %v772 = vadd.f32 0.0, %v771
      %v773 = vpop.f32.mrf.mxu0
      %v774 = vadd.f32 0.0, %v773
      %775 = vmatmul.bf16.gmra.mxu0 %v689
      %v776 = vpop.f32.mrf.mxu0
      %v777 = vadd.f32 0.0, %v776
      %v778 = vpop.f32.mrf.mxu0
      %v779 = vadd.f32 0.0, %v778
      %780 = vmatmul.bf16.gmra.mxu0 %v692
      %v781 = vpop.f32.mrf.mxu0
      %v782 = vadd.f32 0.0, %v781
      %v783 = vpop.f32.mrf.mxu0
      %v784 = vadd.f32 0.0, %v783
      %785 = vdwg.mxu0
      %v786 = vld [vmem:[#allocation2] sm:$0xff]
      %v787 = vld [vmem:[#allocation2 + $0x8] sm:$0xff]
      %v788 = vld [vmem:[#allocation2 + $0x10] sm:$0xff]
      %v789 = vld [vmem:[#allocation2 + $0x18] sm:$0xff]
      %v790 = vld [vmem:[#allocation2 + $0x20] sm:$0xff]
      %v791 = vld [vmem:[#allocation2 + $0x28] sm:$0xff]
      %v792 = vld [vmem:[#allocation2 + $0x30] sm:$0xff]
      %v793 = vld [vmem:[#allocation2 + $0x38] sm:$0xff]
      %v794 = vld [vmem:[#allocation2 + $0x40] sm:$0xff]
      %v795 = vld [vmem:[#allocation2 + $0x48] sm:$0xff]
      %v796 = vld [vmem:[#allocation2 + $0x50] sm:$0xff]
      %v797 = vld [vmem:[#allocation2 + $0x58] sm:$0xff]
      %v798 = vld [vmem:[#allocation2 + $0x60] sm:$0xff]
      %v799 = vld [vmem:[#allocation2 + $0x68] sm:$0xff]
      %v800 = vld [vmem:[#allocation2 + $0x70] sm:$0xff]
      %v801 = vld [vmem:[#allocation2 + $0x78] sm:$0xff]
      %v802 = vld [vmem:[#allocation2 + $0x80] sm:$0xff]
      %v803 = vld [vmem:[#allocation2 + $0x88] sm:$0xff]
      %v804 = vld [vmem:[#allocation2 + $0x90] sm:$0xff]
      %v805 = vld [vmem:[#allocation2 + $0x98] sm:$0xff]
      %v806 = vld [vmem:[#allocation2 + $0xa0] sm:$0xff]
      %v807 = vld [vmem:[#allocation2 + $0xa8] sm:$0xff]
      %v808 = vld [vmem:[#allocation2 + $0xb0] sm:$0xff]
      %v809 = vld [vmem:[#allocation2 + $0xb8] sm:$0xff]
      %v810 = vld [vmem:[#allocation2 + $0xc0] sm:$0xff]
      %v811 = vld [vmem:[#allocation2 + $0xc8] sm:$0xff]
      %v812 = vld [vmem:[#allocation2 + $0xd0] sm:$0xff]
      %v813 = vld [vmem:[#allocation2 + $0xd8] sm:$0xff]
      %v814 = vld [vmem:[#allocation2 + $0xe0] sm:$0xff]
      %v815 = vld [vmem:[#allocation2 + $0xe8] sm:$0xff]
      %v816 = vld [vmem:[#allocation2 + $0xf0] sm:$0xff]
      %v817 = vld [vmem:[#allocation2 + $0xf8] sm:$0xff]
      %v818 = vadd.f32 %v786, %v707
      %v819 = vadd.f32 %v787, %v709
      %v820 = vadd.f32 %v788, %v712
      %v821 = vadd.f32 %v789, %v714
      %v822 = vadd.f32 %v790, %v717
      %v823 = vadd.f32 %v791, %v719
      %v824 = vadd.f32 %v792, %v722
      %v825 = vadd.f32 %v793, %v724
      %v826 = vadd.f32 %v794, %v727
      %v827 = vadd.f32 %v795, %v729
      %v828 = vadd.f32 %v796, %v732
      %v829 = vadd.f32 %v797, %v734
      %v830 = vadd.f32 %v798, %v737
      %v831 = vadd.f32 %v799, %v739
      %v832 = vadd.f32 %v800, %v742
      %v833 = vadd.f32 %v801, %v744
      %v834 = vadd.f32 %v802, %v747
      %v835 = vadd.f32 %v803, %v749
      %v836 = vadd.f32 %v804, %v752
      %v837 = vadd.f32 %v805, %v754
      %v838 = vadd.f32 %v806, %v757
      %v839 = vadd.f32 %v807, %v759
      %v840 = vadd.f32 %v808, %v762
      %v841 = vadd.f32 %v809, %v764
      %v842 = vadd.f32 %v810, %v767
      %v843 = vadd.f32 %v811, %v769
      %v844 = vadd.f32 %v812, %v772
      %v845 = vadd.f32 %v813, %v774
      %v846 = vadd.f32 %v814, %v777
      %v847 = vadd.f32 %v815, %v779
      %v848 = vadd.f32 %v816, %v782
      %v849 = vadd.f32 %v817, %v784
      %850 = vst.msk [vmem:[#allocation2] sm:$0xff] %vm489, %v818
      %851 = vst.msk [vmem:[#allocation2 + $0x8] sm:$0xff] %vm489, %v819
      %852 = vst.msk [vmem:[#allocation2 + $0x10] sm:$0xff] %vm489, %v820
      %853 = vst.msk [vmem:[#allocation2 + $0x18] sm:$0xff] %vm489, %v821
      %854 = vst.msk [vmem:[#allocation2 + $0x20] sm:$0xff] %vm489, %v822
      %855 = vst.msk [vmem:[#allocation2 + $0x28] sm:$0xff] %vm489, %v823
      %856 = vst.msk [vmem:[#allocation2 + $0x30] sm:$0xff] %vm489, %v824
      %857 = vst.msk [vmem:[#allocation2 + $0x38] sm:$0xff] %vm489, %v825
      %858 = vst.msk [vmem:[#allocation2 + $0x40] sm:$0xff] %vm489, %v826
      %859 = vst.msk [vmem:[#allocation2 + $0x48] sm:$0xff] %vm489, %v827
      %860 = vst.msk [vmem:[#allocation2 + $0x50] sm:$0xff] %vm489, %v828
      %861 = vst.msk [vmem:[#allocation2 + $0x58] sm:$0xff] %vm489, %v829
      %862 = vst.msk [vmem:[#allocation2 + $0x60] sm:$0xff] %vm489, %v830
      %863 = vst.msk [vmem:[#allocation2 + $0x68] sm:$0xff] %vm489, %v831
      %864 = vst.msk [vmem:[#allocation2 + $0x70] sm:$0xff] %vm489, %v832
      %865 = vst.msk [vmem:[#allocation2 + $0x78] sm:$0xff] %vm489, %v833
      %866 = vst.msk [vmem:[#allocation2 + $0x80] sm:$0xff] %vm489, %v834
      %867 = vst.msk [vmem:[#allocation2 + $0x88] sm:$0xff] %vm489, %v835
      %868 = vst.msk [vmem:[#allocation2 + $0x90] sm:$0xff] %vm489, %v836
      %869 = vst.msk [vmem:[#allocation2 + $0x98] sm:$0xff] %vm489, %v837
      %870 = vst.msk [vmem:[#allocation2 + $0xa0] sm:$0xff] %vm489, %v838
      %871 = vst.msk [vmem:[#allocation2 + $0xa8] sm:$0xff] %vm489, %v839
      %872 = vst.msk [vmem:[#allocation2 + $0xb0] sm:$0xff] %vm489, %v840
      %873 = vst.msk [vmem:[#allocation2 + $0xb8] sm:$0xff] %vm489, %v841
      %874 = vst.msk [vmem:[#allocation2 + $0xc0] sm:$0xff] %vm489, %v842
      %875 = vst.msk [vmem:[#allocation2 + $0xc8] sm:$0xff] %vm489, %v843
      %876 = vst.msk [vmem:[#allocation2 + $0xd0] sm:$0xff] %vm489, %v844
      %877 = vst.msk [vmem:[#allocation2 + $0xd8] sm:$0xff] %vm489, %v845
      %878 = vst.msk [vmem:[#allocation2 + $0xe0] sm:$0xff] %vm489, %v846
      %879 = vst.msk [vmem:[#allocation2 + $0xe8] sm:$0xff] %vm489, %v847
      %880 = vst.msk [vmem:[#allocation2 + $0xf0] sm:$0xff] %vm489, %v848
      %881 = vst.msk [vmem:[#allocation2 + $0xf8] sm:$0xff] %vm489, %v849
      %s882 = sadd.s32 %s224, 2
      %s883 = smul.u32 %s882, 2
      %s884 = smul.addr %s883, 4
      %s885 = scalar_lea.vmem %s211, %s884
      %v886 = vld [vmem:[%s885] sm:$0xf]
      %v887 = vld [vmem:[%s885 + $0x4] sm:$0xf]
      %v888 = vld [vmem:[%s885 + $0x8] sm:$0xf]
      %v889 = vld [vmem:[%s885 + $0xc] sm:$0xf]
      %v890 = vld [vmem:[%s885 + $0x10] sm:$0xf]
      %v891 = vld [vmem:[%s885 + $0x14] sm:$0xf]
      %v892 = vld [vmem:[%s885 + $0x18] sm:$0xf]
      %v893 = vld [vmem:[%s885 + $0x1c] sm:$0xf]
      %v894 = vld [vmem:[%s885 + $0x20] sm:$0xf]
      %v895 = vld [vmem:[%s885 + $0x24] sm:$0xf]
      %v896 = vld [vmem:[%s885 + $0x28] sm:$0xf]
      %v897 = vld [vmem:[%s885 + $0x2c] sm:$0xf]
      %v898 = vld [vmem:[%s885 + $0x30] sm:$0xf]
      %v899 = vld [vmem:[%s885 + $0x34] sm:$0xf]
      %v900 = vld [vmem:[%s885 + $0x38] sm:$0xf]
      %v901 = vld [vmem:[%s885 + $0x3c] sm:$0xf]
      %v902 = vld [vmem:[%s885 + $0x40] sm:$0xf]
      %v903 = vld [vmem:[%s885 + $0x44] sm:$0xf]
      %v904 = vld [vmem:[%s885 + $0x48] sm:$0xf]
      %v905 = vld [vmem:[%s885 + $0x4c] sm:$0xf]
      %v906 = vld [vmem:[%s885 + $0x50] sm:$0xf]
      %v907 = vld [vmem:[%s885 + $0x54] sm:$0xf]
      %v908 = vld [vmem:[%s885 + $0x58] sm:$0xf]
      %v909 = vld [vmem:[%s885 + $0x5c] sm:$0xf]
      %v910 = vld [vmem:[%s885 + $0x60] sm:$0xf]
      %v911 = vld [vmem:[%s885 + $0x64] sm:$0xf]
      %v912 = vld [vmem:[%s885 + $0x68] sm:$0xf]
      %v913 = vld [vmem:[%s885 + $0x6c] sm:$0xf]
      %v914 = vld [vmem:[%s885 + $0x70] sm:$0xf]
      %v915 = vld [vmem:[%s885 + $0x74] sm:$0xf]
      %v916 = vld [vmem:[%s885 + $0x78] sm:$0xf]
      %v917 = vld [vmem:[%s885 + $0x7c] sm:$0xf]
      %s918 = scalar_lea.vmem %s1, 16
      %v919 = vld [vmem:[%s918] sm:$0xf]
      %v920 = vld [vmem:[%s918 + $0x4] sm:$0x3]
      %v953 = vunpack.c.l.b16 %v886
      %v954 = vunpack.c.l.b16 %v887
      %v955 = vunpack.c.l.b16 %v888
      %v956 = vunpack.c.l.b16 %v889
      %v957 = vunpack.c.l.b16 %v890
      %v958 = vunpack.c.l.b16 %v891
      %v959 = vunpack.c.l.b16 %v892
      %v960 = vunpack.c.l.b16 %v893
      %v961 = vunpack.c.l.b16 %v894
      %v962 = vunpack.c.l.b16 %v895
      %v963 = vunpack.c.l.b16 %v896
      %v964 = vunpack.c.l.b16 %v897
      %v965 = vunpack.c.l.b16 %v898
      %v966 = vunpack.c.l.b16 %v899
      %v967 = vunpack.c.l.b16 %v900
      %v968 = vunpack.c.l.b16 %v901
      %v969 = vunpack.c.l.b16 %v902
      %v970 = vunpack.c.l.b16 %v903
      %v971 = vunpack.c.l.b16 %v904
      %v972 = vunpack.c.l.b16 %v905
      %v973 = vunpack.c.l.b16 %v906
      %v974 = vunpack.c.l.b16 %v907
      %v975 = vunpack.c.l.b16 %v908
      %v976 = vunpack.c.l.b16 %v909
      %v977 = vunpack.c.l.b16 %v910
      %v978 = vunpack.c.l.b16 %v911
      %v979 = vunpack.c.l.b16 %v912
      %v980 = vunpack.c.l.b16 %v913
      %v981 = vunpack.c.l.b16 %v914
      %v982 = vunpack.c.l.b16 %v915
      %v983 = vunpack.c.l.b16 %v916
      %v984 = vunpack.c.l.b16 %v917
      %v985 = vpack.c.b16 %v954, %v953
      %v986 = vpack.c.b16 %v956, %v955
      %v987 = vpack.c.b16 %v958, %v957
      %v988 = vpack.c.b16 %v960, %v959
      %v989 = vpack.c.b16 %v962, %v961
      %v990 = vpack.c.b16 %v964, %v963
      %v991 = vpack.c.b16 %v966, %v965
      %v992 = vpack.c.b16 %v968, %v967
      %v993 = vpack.c.b16 %v970, %v969
      %v994 = vpack.c.b16 %v972, %v971
      %v995 = vpack.c.b16 %v974, %v973
      %v996 = vpack.c.b16 %v976, %v975
      %v997 = vpack.c.b16 %v978, %v977
      %v998 = vpack.c.b16 %v980, %v979
      %v999 = vpack.c.b16 %v982, %v981
      %v1000 = vpack.c.b16 %v984, %v983
      %v1003 = vunpack.c.l.b16 %v919
      %v1004 = vunpack.c.l.b16 %v920
      %v1005 = vpack.c.b16 %v1004, %v1003
      %v1007 = vsel %vm347, %v985, 0
      %v1010 = vsel %vm347, %v986, 0
      %v1013 = vsel %vm347, %v987, 0
      %v1016 = vsel %vm347, %v988, 0
      %v1019 = vsel %vm347, %v989, 0
      %v1022 = vsel %vm347, %v990, 0
      %v1025 = vsel %vm347, %v991, 0
      %v1028 = vsel %vm347, %v992, 0
      %v1031 = vsel %vm347, %v993, 0
      %v1034 = vsel %vm347, %v994, 0
      %v1037 = vsel %vm347, %v995, 0
      %v1040 = vsel %vm347, %v996, 0
      %v1043 = vsel %vm347, %v997, 0
      %v1046 = vsel %vm347, %v998, 0
      %v1049 = vsel %vm347, %v999, 0
      %v1052 = vsel %vm347, %v1000, 0
      %v1055 = vsel %vm396, %v1005, 0
      %1057 = vmatpush.bf16.msra.mxu0 0
      %1058 = vmatpush.bf16.msra.mxu0 0
      %1059 = vmatpush.bf16.msra.mxu0 0
      %1060 = vmatpush.bf16.msra.mxu0 0
      %1061 = vmatpush.bf16.msra.mxu0 0
      %1062 = vmatpush.bf16.msra.mxu0 0
      %1063 = vmatpush.bf16.msra.mxu0 0
      %1064 = vmatpush.bf16.msra.mxu0 %v1055
      %1065 = vmatmul.bf16.gmra.mxu0 %v1007
      %v1066 = vpop.f32.mrf.mxu0
      %v1067 = vadd.f32 0.0, %v1066
      %v1068 = vpop.f32.mrf.mxu0
      %v1069 = vadd.f32 0.0, %v1068
      %1070 = vmatmul.bf16.gmra.mxu0 %v1010
      %v1071 = vpop.f32.mrf.mxu0
      %v1072 = vadd.f32 0.0, %v1071
      %v1073 = vpop.f32.mrf.mxu0
      %v1074 = vadd.f32 0.0, %v1073
      %1075 = vmatmul.bf16.gmra.mxu0 %v1013
      %v1076 = vpop.f32.mrf.mxu0
      %v1077 = vadd.f32 0.0, %v1076
      %v1078 = vpop.f32.mrf.mxu0
      %v1079 = vadd.f32 0.0, %v1078
      %1080 = vmatmul.bf16.gmra.mxu0 %v1016
      %v1081 = vpop.f32.mrf.mxu0
      %v1082 = vadd.f32 0.0, %v1081
      %v1083 = vpop.f32.mrf.mxu0
      %v1084 = vadd.f32 0.0, %v1083
      %1085 = vmatmul.bf16.gmra.mxu0 %v1019
      %v1086 = vpop.f32.mrf.mxu0
      %v1087 = vadd.f32 0.0, %v1086
      %v1088 = vpop.f32.mrf.mxu0
      %v1089 = vadd.f32 0.0, %v1088
      %1090 = vmatmul.bf16.gmra.mxu0 %v1022
      %v1091 = vpop.f32.mrf.mxu0
      %v1092 = vadd.f32 0.0, %v1091
      %v1093 = vpop.f32.mrf.mxu0
      %v1094 = vadd.f32 0.0, %v1093
      %1095 = vmatmul.bf16.gmra.mxu0 %v1025
      %v1096 = vpop.f32.mrf.mxu0
      %v1097 = vadd.f32 0.0, %v1096
      %v1098 = vpop.f32.mrf.mxu0
      %v1099 = vadd.f32 0.0, %v1098
      %1100 = vmatmul.bf16.gmra.mxu0 %v1028
      %v1101 = vpop.f32.mrf.mxu0
      %v1102 = vadd.f32 0.0, %v1101
      %v1103 = vpop.f32.mrf.mxu0
      %v1104 = vadd.f32 0.0, %v1103
      %1105 = vmatmul.bf16.gmra.mxu0 %v1031
      %v1106 = vpop.f32.mrf.mxu0
      %v1107 = vadd.f32 0.0, %v1106
      %v1108 = vpop.f32.mrf.mxu0
      %v1109 = vadd.f32 0.0, %v1108
      %1110 = vmatmul.bf16.gmra.mxu0 %v1034
      %v1111 = vpop.f32.mrf.mxu0
      %v1112 = vadd.f32 0.0, %v1111
      %v1113 = vpop.f32.mrf.mxu0
      %v1114 = vadd.f32 0.0, %v1113
      %1115 = vmatmul.bf16.gmra.mxu0 %v1037
      %v1116 = vpop.f32.mrf.mxu0
      %v1117 = vadd.f32 0.0, %v1116
      %v1118 = vpop.f32.mrf.mxu0
      %v1119 = vadd.f32 0.0, %v1118
      %1120 = vmatmul.bf16.gmra.mxu0 %v1040
      %v1121 = vpop.f32.mrf.mxu0
      %v1122 = vadd.f32 0.0, %v1121
      %v1123 = vpop.f32.mrf.mxu0
      %v1124 = vadd.f32 0.0, %v1123
      %1125 = vmatmul.bf16.gmra.mxu0 %v1043
      %v1126 = vpop.f32.mrf.mxu0
      %v1127 = vadd.f32 0.0, %v1126
      %v1128 = vpop.f32.mrf.mxu0
      %v1129 = vadd.f32 0.0, %v1128
      %1130 = vmatmul.bf16.gmra.mxu0 %v1046
      %v1131 = vpop.f32.mrf.mxu0
      %v1132 = vadd.f32 0.0, %v1131
      %v1133 = vpop.f32.mrf.mxu0
      %v1134 = vadd.f32 0.0, %v1133
      %1135 = vmatmul.bf16.gmra.mxu0 %v1049
      %v1136 = vpop.f32.mrf.mxu0
      %v1137 = vadd.f32 0.0, %v1136
      %v1138 = vpop.f32.mrf.mxu0
      %v1139 = vadd.f32 0.0, %v1138
      %1140 = vmatmul.bf16.gmra.mxu0 %v1052
      %v1141 = vpop.f32.mrf.mxu0
      %v1142 = vadd.f32 0.0, %v1141
      %v1143 = vpop.f32.mrf.mxu0
      %v1144 = vadd.f32 0.0, %v1143
      %1145 = vdwg.mxu0
      %v1146 = vld [vmem:[#allocation2] sm:$0xff]
      %v1147 = vld [vmem:[#allocation2 + $0x8] sm:$0xff]
      %v1148 = vld [vmem:[#allocation2 + $0x10] sm:$0xff]
      %v1149 = vld [vmem:[#allocation2 + $0x18] sm:$0xff]
      %v1150 = vld [vmem:[#allocation2 + $0x20] sm:$0xff]
      %v1151 = vld [vmem:[#allocation2 + $0x28] sm:$0xff]
      %v1152 = vld [vmem:[#allocation2 + $0x30] sm:$0xff]
      %v1153 = vld [vmem:[#allocation2 + $0x38] sm:$0xff]
      %v1154 = vld [vmem:[#allocation2 + $0x40] sm:$0xff]
      %v1155 = vld [vmem:[#allocation2 + $0x48] sm:$0xff]
      %v1156 = vld [vmem:[#allocation2 + $0x50] sm:$0xff]
      %v1157 = vld [vmem:[#allocation2 + $0x58] sm:$0xff]
      %v1158 = vld [vmem:[#allocation2 + $0x60] sm:$0xff]
      %v1159 = vld [vmem:[#allocation2 + $0x68] sm:$0xff]
      %v1160 = vld [vmem:[#allocation2 + $0x70] sm:$0xff]
      %v1161 = vld [vmem:[#allocation2 + $0x78] sm:$0xff]
      %v1162 = vld [vmem:[#allocation2 + $0x80] sm:$0xff]
      %v1163 = vld [vmem:[#allocation2 + $0x88] sm:$0xff]
      %v1164 = vld [vmem:[#allocation2 + $0x90] sm:$0xff]
      %v1165 = vld [vmem:[#allocation2 + $0x98] sm:$0xff]
      %v1166 = vld [vmem:[#allocation2 + $0xa0] sm:$0xff]
      %v1167 = vld [vmem:[#allocation2 + $0xa8] sm:$0xff]
      %v1168 = vld [vmem:[#allocation2 + $0xb0] sm:$0xff]
      %v1169 = vld [vmem:[#allocation2 + $0xb8] sm:$0xff]
      %v1170 = vld [vmem:[#allocation2 + $0xc0] sm:$0xff]
      %v1171 = vld [vmem:[#allocation2 + $0xc8] sm:$0xff]
      %v1172 = vld [vmem:[#allocation2 + $0xd0] sm:$0xff]
      %v1173 = vld [vmem:[#allocation2 + $0xd8] sm:$0xff]
      %v1174 = vld [vmem:[#allocation2 + $0xe0] sm:$0xff]
      %v1175 = vld [vmem:[#allocation2 + $0xe8] sm:$0xff]
      %v1176 = vld [vmem:[#allocation2 + $0xf0] sm:$0xff]
      %v1177 = vld [vmem:[#allocation2 + $0xf8] sm:$0xff]
      %v1178 = vadd.f32 %v1146, %v1067
      %v1179 = vadd.f32 %v1147, %v1069
      %v1180 = vadd.f32 %v1148, %v1072
      %v1181 = vadd.f32 %v1149, %v1074
      %v1182 = vadd.f32 %v1150, %v1077
      %v1183 = vadd.f32 %v1151, %v1079
      %v1184 = vadd.f32 %v1152, %v1082
      %v1185 = vadd.f32 %v1153, %v1084
      %v1186 = vadd.f32 %v1154, %v1087
      %v1187 = vadd.f32 %v1155, %v1089
      %v1188 = vadd.f32 %v1156, %v1092
      %v1189 = vadd.f32 %v1157, %v1094
      %v1190 = vadd.f32 %v1158, %v1097
      %v1191 = vadd.f32 %v1159, %v1099
      %v1192 = vadd.f32 %v1160, %v1102
      %v1193 = vadd.f32 %v1161, %v1104
      %v1194 = vadd.f32 %v1162, %v1107
      %v1195 = vadd.f32 %v1163, %v1109
      %v1196 = vadd.f32 %v1164, %v1112
      %v1197 = vadd.f32 %v1165, %v1114
      %v1198 = vadd.f32 %v1166, %v1117
      %v1199 = vadd.f32 %v1167, %v1119
      %v1200 = vadd.f32 %v1168, %v1122
      %v1201 = vadd.f32 %v1169, %v1124
      %v1202 = vadd.f32 %v1170, %v1127
      %v1203 = vadd.f32 %v1171, %v1129
      %v1204 = vadd.f32 %v1172, %v1132
      %v1205 = vadd.f32 %v1173, %v1134
      %v1206 = vadd.f32 %v1174, %v1137
      %v1207 = vadd.f32 %v1175, %v1139
      %v1208 = vadd.f32 %v1176, %v1142
      %v1209 = vadd.f32 %v1177, %v1144
      %1210 = vst.msk [vmem:[#allocation2] sm:$0xff] %vm489, %v1178
      %1211 = vst.msk [vmem:[#allocation2 + $0x8] sm:$0xff] %vm489, %v1179
      %1212 = vst.msk [vmem:[#allocation2 + $0x10] sm:$0xff] %vm489, %v1180
      %1213 = vst.msk [vmem:[#allocation2 + $0x18] sm:$0xff] %vm489, %v1181
      %1214 = vst.msk [vmem:[#allocation2 + $0x20] sm:$0xff] %vm489, %v1182
      %1215 = vst.msk [vmem:[#allocation2 + $0x28] sm:$0xff] %vm489, %v1183
      %1216 = vst.msk [vmem:[#allocation2 + $0x30] sm:$0xff] %vm489, %v1184
      %1217 = vst.msk [vmem:[#allocation2 + $0x38] sm:$0xff] %vm489, %v1185
      %1218 = vst.msk [vmem:[#allocation2 + $0x40] sm:$0xff] %vm489, %v1186
      %1219 = vst.msk [vmem:[#allocation2 + $0x48] sm:$0xff] %vm489, %v1187
      %1220 = vst.msk [vmem:[#allocation2 + $0x50] sm:$0xff] %vm489, %v1188
      %1221 = vst.msk [vmem:[#allocation2 + $0x58] sm:$0xff] %vm489, %v1189
      %1222 = vst.msk [vmem:[#allocation2 + $0x60] sm:$0xff] %vm489, %v1190
      %1223 = vst.msk [vmem:[#allocation2 + $0x68] sm:$0xff] %vm489, %v1191
      %1224 = vst.msk [vmem:[#allocation2 + $0x70] sm:$0xff] %vm489, %v1192
      %1225 = vst.msk [vmem:[#allocation2 + $0x78] sm:$0xff] %vm489, %v1193
      %1226 = vst.msk [vmem:[#allocation2 + $0x80] sm:$0xff] %vm489, %v1194
      %1227 = vst.msk [vmem:[#allocation2 + $0x88] sm:$0xff] %vm489, %v1195
      %1228 = vst.msk [vmem:[#allocation2 + $0x90] sm:$0xff] %vm489, %v1196
      %1229 = vst.msk [vmem:[#allocation2 + $0x98] sm:$0xff] %vm489, %v1197
      %1230 = vst.msk [vmem:[#allocation2 + $0xa0] sm:$0xff] %vm489, %v1198
      %1231 = vst.msk [vmem:[#allocation2 + $0xa8] sm:$0xff] %vm489, %v1199
      %1232 = vst.msk [vmem:[#allocation2 + $0xb0] sm:$0xff] %vm489, %v1200
      %1233 = vst.msk [vmem:[#allocation2 + $0xb8] sm:$0xff] %vm489, %v1201
      %1234 = vst.msk [vmem:[#allocation2 + $0xc0] sm:$0xff] %vm489, %v1202
      %1235 = vst.msk [vmem:[#allocation2 + $0xc8] sm:$0xff] %vm489, %v1203
      %1236 = vst.msk [vmem:[#allocation2 + $0xd0] sm:$0xff] %vm489, %v1204
      %1237 = vst.msk [vmem:[#allocation2 + $0xd8] sm:$0xff] %vm489, %v1205
      %1238 = vst.msk [vmem:[#allocation2 + $0xe0] sm:$0xff] %vm489, %v1206
      %1239 = vst.msk [vmem:[#allocation2 + $0xe8] sm:$0xff] %vm489, %v1207
      %1240 = vst.msk [vmem:[#allocation2 + $0xf0] sm:$0xff] %vm489, %v1208
      %1241 = vst.msk [vmem:[#allocation2 + $0xf8] sm:$0xff] %vm489, %v1209
      %v1242 = vld [vmem:[#allocation2] sm:$0xff]
      %v1243 = vld [vmem:[#allocation2 + $0x8] sm:$0xff]
      %v1244 = vld [vmem:[#allocation2 + $0x10] sm:$0xff]
      %v1245 = vld [vmem:[#allocation2 + $0x18] sm:$0xff]
      %v1246 = vld [vmem:[#allocation2 + $0x20] sm:$0xff]
      %v1247 = vld [vmem:[#allocation2 + $0x28] sm:$0xff]
      %v1248 = vld [vmem:[#allocation2 + $0x30] sm:$0xff]
      %v1249 = vld [vmem:[#allocation2 + $0x38] sm:$0xff]
      %v1250 = vld [vmem:[#allocation2 + $0x40] sm:$0xff]
      %v1251 = vld [vmem:[#allocation2 + $0x48] sm:$0xff]
      %v1252 = vld [vmem:[#allocation2 + $0x50] sm:$0xff]
      %v1253 = vld [vmem:[#allocation2 + $0x58] sm:$0xff]
      %v1254 = vld [vmem:[#allocation2 + $0x60] sm:$0xff]
      %v1255 = vld [vmem:[#allocation2 + $0x68] sm:$0xff]
      %v1256 = vld [vmem:[#allocation2 + $0x70] sm:$0xff]
      %v1257 = vld [vmem:[#allocation2 + $0x78] sm:$0xff]
      %v1258 = vld [vmem:[#allocation2 + $0x80] sm:$0xff]
      %v1259 = vld [vmem:[#allocation2 + $0x88] sm:$0xff]
      %v1260 = vld [vmem:[#allocation2 + $0x90] sm:$0xff]
      %v1261 = vld [vmem:[#allocation2 + $0x98] sm:$0xff]
      %v1262 = vld [vmem:[#allocation2 + $0xa0] sm:$0xff]
      %v1263 = vld [vmem:[#allocation2 + $0xa8] sm:$0xff]
      %v1264 = vld [vmem:[#allocation2 + $0xb0] sm:$0xff]
      %v1265 = vld [vmem:[#allocation2 + $0xb8] sm:$0xff]
      %v1266 = vld [vmem:[#allocation2 + $0xc0] sm:$0xff]
      %v1267 = vld [vmem:[#allocation2 + $0xc8] sm:$0xff]
      %v1268 = vld [vmem:[#allocation2 + $0xd0] sm:$0xff]
      %v1269 = vld [vmem:[#allocation2 + $0xd8] sm:$0xff]
      %v1270 = vld [vmem:[#allocation2 + $0xe0] sm:$0xff]
      %v1271 = vld [vmem:[#allocation2 + $0xe8] sm:$0xff]
      %v1272 = vld [vmem:[#allocation2 + $0xf0] sm:$0xff]
      %v1273 = vld [vmem:[#allocation2 + $0xf8] sm:$0xff]
      %v1274 = vld [vmem:[%s2] sm:$0x1]
      %v1276 = vperm.slane %v1274, 0
      %v1278 = vmul.f32 %v1242, %v1276
      %v1279 = vmul.f32 %v1243, %v1276
      %v1280 = vmul.f32 %v1244, %v1276
      %v1281 = vmul.f32 %v1245, %v1276
      %v1282 = vmul.f32 %v1246, %v1276
      %v1283 = vmul.f32 %v1247, %v1276
      %v1284 = vmul.f32 %v1248, %v1276
      %v1285 = vmul.f32 %v1249, %v1276
      %v1286 = vmul.f32 %v1250, %v1276
      %v1287 = vmul.f32 %v1251, %v1276
      %v1288 = vmul.f32 %v1252, %v1276
      %v1289 = vmul.f32 %v1253, %v1276
      %v1290 = vmul.f32 %v1254, %v1276
      %v1291 = vmul.f32 %v1255, %v1276
      %v1292 = vmul.f32 %v1256, %v1276
      %v1293 = vmul.f32 %v1257, %v1276
      %v1294 = vmul.f32 %v1258, %v1276
      %v1295 = vmul.f32 %v1259, %v1276
      %v1296 = vmul.f32 %v1260, %v1276
      %v1297 = vmul.f32 %v1261, %v1276
      %v1298 = vmul.f32 %v1262, %v1276
      %v1299 = vmul.f32 %v1263, %v1276
      %v1300 = vmul.f32 %v1264, %v1276
      %v1301 = vmul.f32 %v1265, %v1276
      %v1302 = vmul.f32 %v1266, %v1276
      %v1303 = vmul.f32 %v1267, %v1276
      %v1304 = vmul.f32 %v1268, %v1276
      %v1305 = vmul.f32 %v1269, %v1276
      %v1306 = vmul.f32 %v1270, %v1276
      %v1307 = vmul.f32 %v1271, %v1276
      %v1308 = vmul.f32 %v1272, %v1276
      %v1309 = vmul.f32 %v1273, %v1276
      %v1310 = vld [vmem:[%s3] sm:$0x1]
      %v1312 = vperm.slane %v1310, 0
      %v1314 = vadd.f32 %v1278, %v1312
      %v1315 = vadd.f32 %v1279, %v1312
      %v1316 = vadd.f32 %v1280, %v1312
      %v1317 = vadd.f32 %v1281, %v1312
      %v1318 = vadd.f32 %v1282, %v1312
      %v1319 = vadd.f32 %v1283, %v1312
      %v1320 = vadd.f32 %v1284, %v1312
      %v1321 = vadd.f32 %v1285, %v1312
      %v1322 = vadd.f32 %v1286, %v1312
      %v1323 = vadd.f32 %v1287, %v1312
      %v1324 = vadd.f32 %v1288, %v1312
      %v1325 = vadd.f32 %v1289, %v1312
      %v1326 = vadd.f32 %v1290, %v1312
      %v1327 = vadd.f32 %v1291, %v1312
      %v1328 = vadd.f32 %v1292, %v1312
      %v1329 = vadd.f32 %v1293, %v1312
      %v1330 = vadd.f32 %v1294, %v1312
      %v1331 = vadd.f32 %v1295, %v1312
      %v1332 = vadd.f32 %v1296, %v1312
      %v1333 = vadd.f32 %v1297, %v1312
      %v1334 = vadd.f32 %v1298, %v1312
      %v1335 = vadd.f32 %v1299, %v1312
      %v1336 = vadd.f32 %v1300, %v1312
      %v1337 = vadd.f32 %v1301, %v1312
      %v1338 = vadd.f32 %v1302, %v1312
      %v1339 = vadd.f32 %v1303, %v1312
      %v1340 = vadd.f32 %v1304, %v1312
      %v1341 = vadd.f32 %v1305, %v1312
      %v1342 = vadd.f32 %v1306, %v1312
      %v1343 = vadd.f32 %v1307, %v1312
      %v1344 = vadd.f32 %v1308, %v1312
      %v1345 = vadd.f32 %v1309, %v1312
      %v1346 = vmax.f32 %v1314, 0.0
      %v1347 = vmax.f32 %v1315, 0.0
      %v1348 = vmax.f32 %v1316, 0.0
      %v1349 = vmax.f32 %v1317, 0.0
      %v1350 = vmax.f32 %v1318, 0.0
      %v1351 = vmax.f32 %v1319, 0.0
      %v1352 = vmax.f32 %v1320, 0.0
      %v1353 = vmax.f32 %v1321, 0.0
      %v1354 = vmax.f32 %v1322, 0.0
      %v1355 = vmax.f32 %v1323, 0.0
      %v1356 = vmax.f32 %v1324, 0.0
      %v1357 = vmax.f32 %v1325, 0.0
      %v1358 = vmax.f32 %v1326, 0.0
      %v1359 = vmax.f32 %v1327, 0.0
      %v1360 = vmax.f32 %v1328, 0.0
      %v1361 = vmax.f32 %v1329, 0.0
      %v1362 = vmax.f32 %v1330, 0.0
      %v1363 = vmax.f32 %v1331, 0.0
      %v1364 = vmax.f32 %v1332, 0.0
      %v1365 = vmax.f32 %v1333, 0.0
      %v1366 = vmax.f32 %v1334, 0.0
      %v1367 = vmax.f32 %v1335, 0.0
      %v1368 = vmax.f32 %v1336, 0.0
      %v1369 = vmax.f32 %v1337, 0.0
      %v1370 = vmax.f32 %v1338, 0.0
      %v1371 = vmax.f32 %v1339, 0.0
      %v1372 = vmax.f32 %v1340, 0.0
      %v1373 = vmax.f32 %v1341, 0.0
      %v1374 = vmax.f32 %v1342, 0.0
      %v1375 = vmax.f32 %v1343, 0.0
      %v1376 = vmax.f32 %v1344, 0.0
      %v1377 = vmax.f32 %v1345, 0.0
      %v1378 = vpack.c.bf16 %v1346, %v1346
      %v1379 = vpack.c.bf16 %v1347, %v1347
      %v1380 = vpack.c.bf16 %v1348, %v1348
      %v1381 = vpack.c.bf16 %v1349, %v1349
      %v1382 = vpack.c.bf16 %v1350, %v1350
      %v1383 = vpack.c.bf16 %v1351, %v1351
      %v1384 = vpack.c.bf16 %v1352, %v1352
      %v1385 = vpack.c.bf16 %v1353, %v1353
      %v1386 = vpack.c.bf16 %v1354, %v1354
      %v1387 = vpack.c.bf16 %v1355, %v1355
      %v1388 = vpack.c.bf16 %v1356, %v1356
      %v1389 = vpack.c.bf16 %v1357, %v1357
      %v1390 = vpack.c.bf16 %v1358, %v1358
      %v1391 = vpack.c.bf16 %v1359, %v1359
      %v1392 = vpack.c.bf16 %v1360, %v1360
      %v1393 = vpack.c.bf16 %v1361, %v1361
      %v1394 = vpack.c.bf16 %v1362, %v1362
      %v1395 = vpack.c.bf16 %v1363, %v1363
      %v1396 = vpack.c.bf16 %v1364, %v1364
      %v1397 = vpack.c.bf16 %v1365, %v1365
      %v1398 = vpack.c.bf16 %v1366, %v1366
      %v1399 = vpack.c.bf16 %v1367, %v1367
      %v1400 = vpack.c.bf16 %v1368, %v1368
      %v1401 = vpack.c.bf16 %v1369, %v1369
      %v1402 = vpack.c.bf16 %v1370, %v1370
      %v1403 = vpack.c.bf16 %v1371, %v1371
      %v1404 = vpack.c.bf16 %v1372, %v1372
      %v1405 = vpack.c.bf16 %v1373, %v1373
      %v1406 = vpack.c.bf16 %v1374, %v1374
      %v1407 = vpack.c.bf16 %v1375, %v1375
      %v1408 = vpack.c.bf16 %v1376, %v1376
      %v1409 = vpack.c.bf16 %v1377, %v1377
      %vm1410 = vcmask 60416
      %1411 = vst.msk [vmem:[%s221] sm:$0xf] %vm1410, %v1378
      %1412 = vst.msk [vmem:[%s221 + $0x4] sm:$0xf] %vm1410, %v1379
      %1413 = vst.msk [vmem:[%s221 + $0x8] sm:$0xf] %vm1410, %v1380
      %1414 = vst.msk [vmem:[%s221 + $0xc] sm:$0xf] %vm1410, %v1381
      %1415 = vst.msk [vmem:[%s221 + $0x10] sm:$0xf] %vm1410, %v1382
      %1416 = vst.msk [vmem:[%s221 + $0x14] sm:$0xf] %vm1410, %v1383
      %1417 = vst.msk [vmem:[%s221 + $0x18] sm:$0xf] %vm1410, %v1384
      %1418 = vst.msk [vmem:[%s221 + $0x1c] sm:$0xf] %vm1410, %v1385
      %1419 = vst.msk [vmem:[%s221 + $0x20] sm:$0xf] %vm1410, %v1386
      %1420 = vst.msk [vmem:[%s221 + $0x24] sm:$0xf] %vm1410, %v1387
      %1421 = vst.msk [vmem:[%s221 + $0x28] sm:$0xf] %vm1410, %v1388
      %1422 = vst.msk [vmem:[%s221 + $0x2c] sm:$0xf] %vm1410, %v1389
      %1423 = vst.msk [vmem:[%s221 + $0x30] sm:$0xf] %vm1410, %v1390
      %1424 = vst.msk [vmem:[%s221 + $0x34] sm:$0xf] %vm1410, %v1391
      %1425 = vst.msk [vmem:[%s221 + $0x38] sm:$0xf] %vm1410, %v1392
      %1426 = vst.msk [vmem:[%s221 + $0x3c] sm:$0xf] %vm1410, %v1393
      %1427 = vst.msk [vmem:[%s221 + $0x40] sm:$0xf] %vm1410, %v1394
      %1428 = vst.msk [vmem:[%s221 + $0x44] sm:$0xf] %vm1410, %v1395
      %1429 = vst.msk [vmem:[%s221 + $0x48] sm:$0xf] %vm1410, %v1396
      %1430 = vst.msk [vmem:[%s221 + $0x4c] sm:$0xf] %vm1410, %v1397
      %1431 = vst.msk [vmem:[%s221 + $0x50] sm:$0xf] %vm1410, %v1398
      %1432 = vst.msk [vmem:[%s221 + $0x54] sm:$0xf] %vm1410, %v1399
      %1433 = vst.msk [vmem:[%s221 + $0x58] sm:$0xf] %vm1410, %v1400
      %1434 = vst.msk [vmem:[%s221 + $0x5c] sm:$0xf] %vm1410, %v1401
      %1435 = vst.msk [vmem:[%s221 + $0x60] sm:$0xf] %vm1410, %v1402
      %1436 = vst.msk [vmem:[%s221 + $0x64] sm:$0xf] %vm1410, %v1403
      %1437 = vst.msk [vmem:[%s221 + $0x68] sm:$0xf] %vm1410, %v1404
      %1438 = vst.msk [vmem:[%s221 + $0x6c] sm:$0xf] %vm1410, %v1405
      %1439 = vst.msk [vmem:[%s221 + $0x70] sm:$0xf] %vm1410, %v1406
      %1440 = vst.msk [vmem:[%s221 + $0x74] sm:$0xf] %vm1410, %v1407
      %1441 = vst.msk [vmem:[%s221 + $0x78] sm:$0xf] %vm1410, %v1408
      %1442 = vst.msk [vmem:[%s221 + $0x7c] sm:$0xf] %vm1410, %v1409
      %s1443 = smul.u32 16, %s20
      %p1444 = scmp.lt.s32.totalorder %s19, 1
      %s1445 = scalar_select %p1444, %s19, 1
      %p1446 = scmp.lt.s32.totalorder %s1443, 15
      %s1447 = scalar_select %p1446, %s1443, 15
      %s1448 = smul.addr %s1447, 2
      %s1449 = smul.addr %s1445, 32
      %s1450 = sadd.s32 %s1448, %s1449
      %s1451 = smul.addr %s1450, 4
      %s1452 = scalar_lea.vmem %s4, %s1451
      // Predicated region
      $region37: #{basic_conv2d.1} parent=35 // pred_check
        %p1453 = pneg %p136
      $region38: #{basic_conv2d.1} parent=35 // pred_check_branch
        %1455 = sbr.rel (%p1453) target = $region40
      $region39: #{basic_conv2d.1} parent=35 // pred_region
        %s1456 = smul.u32 16, %s20
      $region40: #{basic_conv2d.1} parent=35 // pred_fallthru
        _
    $region36: #{basic_conv2d.1} parent=5 // pred_fallthru
      _
    %p1457 = scmp.le.s32.totalorder 2, %s10
    // Predicated region
    $region41: #{basic_conv2d.1} parent=5 // pred_check
      %p1458 = pneg %p1457
    $region42: #{basic_conv2d.1} parent=5 // pred_check_branch
      %1460 = sbr.rel (%p1458) target = $region44
    $region43: #{basic_conv2d.1} parent=5 // pred_region
      %s1461 = ssub.s32 %s10, 2
      // Predicated region
      $region45: #{basic_conv2d.1} parent=43 // pred_check
        %p1462 = pneg %p142
      $region46: #{basic_conv2d.1} parent=43 // pred_check_branch
        %1464 = sbr.rel (%p1462) target = $region48
      $region47: #{basic_conv2d.1} parent=43 // pred_region
        %s1465 = smul.u32 16, %s22
        %p1466 = scmp.lt.s32.totalorder %s21, 1
        %s1467 = scalar_select %p1466, %s21, 1
        %p1468 = scmp.lt.s32.totalorder %s1465, 15
        %s1469 = scalar_select %p1468, %s1465, 15
        %s1470 = smul.addr %s1469, 2
        %s1471 = smul.addr %s1467, 32
        %s1472 = sadd.s32 %s1470, %s1471
        %s1473 = smul.addr %s1472, 4
        %s1474 = scalar_lea.vmem %s4, %s1473
      $region48: #{basic_conv2d.1} parent=43 // pred_fallthru
        _
    $region44: #{basic_conv2d.1} parent=5 // pred_fallthru
      _
  $region6: #{basic_conv2d.1} parent=0 // loop_footer
    %s14 = sadd.s32 1, %s10
  $region7: #{basic_conv2d.1} parent=0 // loop_footer_branch
    %9 = sbr.rel target = $region3
  $region8: #{basic_conv2d.1} parent=0 // loop_exit
    _

</llo_original>
